<compile_context>
chip_gen: v7x
topology: tpu7x:2x2x1
jax: 0.10.0
libtpu: 0.0.40
codegen_flags: <defaults>
</compile_context>

<pallas_src>
import functools

import jax
import jax.numpy as jnp
from jax.experimental import pallas as pl
from jax.experimental.pallas import tpu as pltpu

_LANE = 128
_SUBLANE = 8
_MAX_V_CHUNK = 1024   # bounds the (tile_n, v_chunk) one-hot intermediate


def _round_up(x, m):
    return ((x + m - 1) // m) * m


def _bf16_split3(w):
    """Exact 3-way bf16 split of an f32 array: hi + mid + lo == w bit-exactly."""
    hi = w.astype(jnp.bfloat16)
    r1 = w - hi.astype(jnp.float32)
    mid = r1.astype(jnp.bfloat16)
    lo = (r1 - mid.astype(jnp.float32)).astype(jnp.bfloat16)
    return hi, mid, lo


def _freq_bias_onehot_kernel(idx_ref, w_ref, o_ref, *, v_chunk):
    # idx_ref: VMEM (tile_n, 1)       int32  flat pair indices for this tile (column layout)
    # w_ref:   VMEM (v_pad, 3*r_pad)  bf16   split table [W_hi | W_mid | W_lo], VMEM-resident
    # o_ref:   VMEM (tile_n, r_pad)   f32    gathered embedding rows
    tile_n, r_pad = o_ref.shape
    v_pad = w_ref.shape[0]
    idx = idx_ref[...]                                            # (tile_n, 1)

    acc = None
    for k0 in range(0, v_pad, v_chunk):                           # static trip count (1 here)
        cols = k0 + jax.lax.broadcasted_iota(jnp.int32, (tile_n, v_chunk), 1)
        onehot = (cols == idx).astype(w_ref.dtype)                # exact 0/1, bf16 MXU operand
        part = jnp.dot(onehot, w_ref[pl.ds(k0, v_chunk), :],
                       preferred_element_type=jnp.float32)        # (tile_n, 3*r_pad) f32
        acc = part if acc is None else acc + part

    # Recombine the bf16 split: exact, the pieces cover disjoint mantissa windows of f32.
    o_ref[...] = (acc[:, 0:r_pad]
                  + acc[:, r_pad:2 * r_pad]
                  + acc[:, 2 * r_pad:3 * r_pad]).astype(o_ref.dtype)


def _frequency_bias_forward(labels, weight, *, num_objs, tile_n=512):
    """labels: int32 [N,2]; weight: f32 [num_objs*num_objs, num_rels] -> f32 [N, num_rels]."""
    n = labels.shape[0]
    v, r = weight.shape
    assert v == num_objs * num_objs
    assert tile_n % _SUBLANE == 0
    weight = weight.astype(jnp.float32)

    # --- index plumbing (same math as the PyTorch module) ------------------------------
    flat_idx = labels[:, 0].astype(jnp.int32) * num_objs + labels[:, 1].astype(jnp.int32)
    flat_idx = jnp.clip(flat_idx, 0, v - 1)            # guard out-of-range labels
    n_pad = _round_up(n, tile_n)
    if n_pad != n:                                     # padded rows gather row 0, trimmed below
        flat_idx = jnp.pad(flat_idx, (0, n_pad - n))
    idx_col = flat_idx.reshape(n_pad, 1)               # (tile_n, 1) blocks (sublane column)

    # --- table layout -------------------------------------------------------------------
    r_pad = _round_up(r, _LANE)                        # lane-dense relations axis
    if v <= _MAX_V_CHUNK:
        v_chunk = _round_up(v, _LANE)
        v_pad = v_chunk
    else:
        v_chunk = _MAX_V_CHUNK
        v_pad = _round_up(v, v_chunk)
    if v_pad != v or r_pad != r:
        w_f32 = jnp.pad(weight, ((0, v_pad - v), (0, r_pad - r)))
    else:
        w_f32 = weight
    # Exact bf16 3-way split packed along the relation axis: [W_hi | W_mid | W_lo].
    w_split = jnp.concatenate(_bf16_split3(w_f32), axis=1)        # (v_pad, 3*r_pad) bf16

    grid = (n_pad // tile_n,)

    # --- VMEM budget (generation-aware) ---------------------------------------------------
    table_bytes = v_pad * 3 * r_pad * 2                # resident split table (x2 buffers below)
    out_tile_bytes = tile_n * r_pad * 4
    idx_tile_bytes = tile_n * _LANE * 4                # (tile_n, 1) i32 pads to a full lane tile
    work_bytes = tile_n * v_chunk * 2 + tile_n * 3 * r_pad * 4    # one-hot + f32 accumulator
    needed = (2 * table_bytes + 2 * out_tile_bytes + 2 * idx_tile_bytes
              + work_bytes + (2 << 20))
    try:
        vmem_cap = int(pltpu.get_tpu_info().vmem_capacity_bytes)  # 64 MiB v7x, 128 MiB v5e/v6e
    except Exception:
        vmem_cap = 64 << 20                            # conservative fallback
    vmem_cap_usable = (vmem_cap * 7) // 8              # leave Mosaic internal-scratch headroom
    if needed > vmem_cap_usable:
        raise ValueError(
            "FrequencyBias table does not fit VMEM-resident: "
            f"need {needed} bytes, usable cap {vmem_cap_usable} bytes "
            "(shrink tile_n or shard the table over a grid axis).")
    vmem_limit = min(vmem_cap_usable, max(needed, 32 << 20))

    cost = pl.CostEstimate(
        flops=2 * n_pad * v_pad * 3 * r_pad,
        transcendentals=0,
        bytes_accessed=table_bytes + n_pad * r_pad * 4 + n_pad * 4,
    )

    kernel = functools.partial(_freq_bias_onehot_kernel, v_chunk=v_chunk)

    out = pl.pallas_call(
        kernel,
        out_shape=jax.ShapeDtypeStruct((n_pad, r_pad), jnp.float32),
        grid_spec=pltpu.PrefetchScalarGridSpec(
            num_scalar_prefetch=0,
            grid=grid,
            in_specs=[
                pl.BlockSpec((tile_n, 1), lambda i: (i, 0)),          # index column per tile
                pl.BlockSpec((v_pad, 3 * r_pad), lambda i: (0, 0)),   # split table, resident
            ],
            out_specs=pl.BlockSpec((tile_n, r_pad), lambda i: (i, 0)),
        ),
        compiler_params=pltpu.CompilerParams(
            dimension_semantics=("parallel",),          # batch axis shards across TCs
            vmem_limit_bytes=vmem_limit,
        ),
        cost_estimate=cost,
    )(idx_col, w_split)

    # Trim the N / num_rels padding (fused into the jitted program).
    return out[:n, :r]


frequency_bias_forward = jax.jit(
    _frequency_bias_forward, static_argnames=("num_objs", "tile_n"))


if __name__ == "__main__":
    key = jax.random.PRNGKey(0)
    k_w, k_lbl = jax.random.split(key)

    # Small synthetic statistics: num_objs x num_objs x num_rels pred_dist, flattened to the
    # embedding weight (deterministic init; checkpoint loading is out of scope).
    num_objs = 16
    num_rels = 51          # not a multiple of 128 -> exercises lane padding
    n_pairs = 1200         # not a multiple of tile_n -> exercises N padding; 3 grid steps

    weight = jax.random.normal(
        k_w, (num_objs * num_objs, num_rels), dtype=jnp.float32
    )
    labels = jax.random.randint(
        k_lbl, (n_pairs, 2), minval=0, maxval=num_objs, dtype=jnp.int32
    )

    out = frequency_bias_forward(labels, weight, num_objs=num_objs)
    out = jax.block_until_ready(out)

    # Reference check (plain JAX gather) — kernel is exact by construction.
    ref = weight[labels[:, 0] * num_objs + labels[:, 1]]
    assert out.shape == (n_pairs, num_rels)
    assert jnp.allclose(out, ref, atol=1e-6, rtol=1e-6)

    print("KERNEL_OK")
</pallas_src>

<mosaic_0001>
module attributes {stable_mosaic.version = 11 : i64} {
  func.func @_freq_bias_onehot_kernel(%arg0: i32, %arg1: memref<512x1xi32, #tpu.memory_space<vmem>>, %arg2: memref<256x384xbf16, #tpu.memory_space<vmem>>, %arg3: memref<512x128xf32, #tpu.memory_space<vmem>>) attributes {dimension_semantics = [#tpu.dimension_semantics<parallel>], iteration_bounds = array<i64: 3>, scalar_prefetch = 0 : i64, scratch_operands = 0 : i64, tpu.core_type = #tpu.core_type<tc>, window_params = [{transform_indices = @transform_0, window_bounds = array<i64: 512, 1>}, {pipeline_mode = #tpu.pipeline_mode<synchronous>, transform_indices = @transform_1, window_bounds = array<i64: 256, 384>}, {transform_indices = @transform_2, window_bounds = array<i64: 512, 128>}]} {
    %c0 = arith.constant 0 : index
    %c0_0 = arith.constant 0 : index
    %0 = vector.load %arg1[%c0, %c0_0] : memref<512x1xi32, #tpu.memory_space<vmem>>, vector<512x1xi32>
    %1 = tpu.iota {dimensions = array<i32: 1>} : vector<512x256xi32>
    %c0_i32 = arith.constant 0 : i32
    %2 = vector.broadcast %c0_i32 : i32 to vector<512x256xi32>
    %3 = arith.addi %2, %1 : vector<512x256xi32>
    %4 = vector.broadcast %0 : vector<512x1xi32> to vector<512x256xi32>
    %5 = arith.cmpi eq, %3, %4 : vector<512x256xi32>
    %6 = arith.extui %5 : vector<512x256xi1> to vector<512x256xi32>
    %7 = arith.sitofp %6 : vector<512x256xi32> to vector<512x256xf32>
    %8 = arith.truncf %7 : vector<512x256xf32> to vector<512x256xbf16>
    %c0_1 = arith.constant 0 : index
    %c0_2 = arith.constant 0 : index
    %9 = vector.load %arg2[%c0_1, %c0_2] : memref<256x384xbf16, #tpu.memory_space<vmem>>, vector<256x384xbf16>
    %cst = arith.constant dense<0.000000e+00> : vector<512x384xf32>
    %10 = tpu.matmul %8, %9, %cst {dimension_numbers = #tpu.dot_dimension_numbers<[1], [0], [0], [1], [0, 0, 1, 1], [], []>} : vector<512x256xbf16>, vector<256x384xbf16>, vector<512x384xf32> -> vector<512x384xf32>
    %11 = vector.extract_strided_slice %10 {offsets = [0, 0], sizes = [512, 128], strides = [1, 1]} : vector<512x384xf32> to vector<512x128xf32>
    %12 = vector.extract_strided_slice %10 {offsets = [0, 128], sizes = [512, 128], strides = [1, 1]} : vector<512x384xf32> to vector<512x128xf32>
    %13 = arith.addf %11, %12 : vector<512x128xf32>
    %14 = vector.extract_strided_slice %10 {offsets = [0, 256], sizes = [512, 128], strides = [1, 1]} : vector<512x384xf32> to vector<512x128xf32>
    %15 = arith.addf %13, %14 : vector<512x128xf32>
    %c0_3 = arith.constant 0 : index
    %c0_4 = arith.constant 0 : index
    %16 = vector.load %arg3[%c0_3, %c0_4] : memref<512x128xf32, #tpu.memory_space<vmem>>, vector<512x128xf32>
    tpu.vector_store %arg3[%c0_3, %c0_4], %15 {strides = array<i32>} : memref<512x128xf32, #tpu.memory_space<vmem>>, vector<512x128xf32>,
    return
  }
  func.func @transform_0(%arg0: i32) -> (i32, i32) {
    %c0_i32 = arith.constant 0 : i32
    %c0_i32_0 = arith.constant 0 : i32
    return %arg0, %c0_i32 : i32, i32
  }
  func.func @transform_1(%arg0: i32) -> (i32, i32) {
    %c0_i32 = arith.constant 0 : i32
    %c0_i32_0 = arith.constant 0 : i32
    %c0_i32_1 = arith.constant 0 : i32
    return %c0_i32, %c0_i32_0 : i32, i32
  }
  func.func @transform_2(%arg0: i32) -> (i32, i32) {
    %c0_i32 = arith.constant 0 : i32
    %c0_i32_0 = arith.constant 0 : i32
    return %arg0, %c0_i32 : i32, i32
  }
}

</mosaic_0001>

<llo_original>
// kernel: _frequency_bias_forward.1
$region0: #{_frequency_bias_forward.1}
  #allocation0 [shape = 'u32[]', space=smem, size = 0x4, offset = 0x4, fixed_abs, tag = 'smem constant byte address 0x4 - core index']
  #allocation1 [shape = 'u32[144,128]{1,0:T(1,128)}', space=vmem, size = 0x12000, scoped, tag = 'internal scratch']
  %s0 = inlined_call_operand.vmem [shape: s32[1536,1], index: 0, kind: input, shape index: {}]
  %s1 = inlined_call_operand.vmem [shape: bf16[256,384], index: 1, kind: input, shape index: {}]
  %s2 = inlined_call_operand.vmem [shape: f32[1536,128], index: 2, kind: output, shape index: {}]
  %s3 = sld [smem:[#allocation0]]
  $region41: #{_frequency_bias_forward.1} parent=0
    _
  %s5 = ssub.s32 1, %s3
  %s6 = scalar_select 0, %s5, %s3
  loop: start=0, step=1, limit=5
  $region2: #{_frequency_bias_forward.1} parent=0 // loop_pre_header
    _
  $region3: #{_frequency_bias_forward.1} parent=0 // loop_header
    %s8 = sphi 0, %s12
    %p9 = scmp.ge.s32.totalorder %s8, 5
    %s18 = sphi 0, %s20
    %s21 = sphi 0, %s18
    %s22 = sphi 0, %s21
    %s38 = sphi 0, %s22
    %s42 = sphi 0, %s42
    %s44 = sphi 0, %s42
    %s45 = sphi 0, %s44
    %s59 = sphi 0, %s45
    %s65 = sphi 0, %s67
    %s68 = sphi 0, %s65
    %s69 = sphi 0, %s68
    %s85 = sphi 0, %s69
  $region4: #{_frequency_bias_forward.1} parent=0 // loop_header_branch
    %11 = sbr.rel (%p9) target = $region8
  $region5: #{_frequency_bias_forward.1} parent=0 // loop_body
    %s13 = ssub.s32 %s8, 1
    %s14 = ssub.s32 %s8, 2
    %s15 = sadd.s32 %s8, 1
    %s16 = ssub.s32 %s8, %s15
    %p17 = scmp.eq.s32.totalorder %s16, 0
    %s19 = sadd.s32 %s18, 1
    %s20 = scalar_select %p17, %s18, %s19
    %p23 = pneg %p17
    %p24 = scmp.eq.s32.totalorder %s8, 2
    %p25 = por %p23, %p24
    %p26 = scmp.ne.s32.totalorder %s18, %s21
    %p27 = scmp.eq.s32.totalorder %s8, 0
    %p28 = por %p26, %p27
    %p29 = scmp.ne.s32.totalorder %s18, %s21
    %p30 = scmp.eq.s32.totalorder %s13, 2
    %p31 = por %p29, %p30
    %p32 = scmp.ne.s32.totalorder %s21, %s22
    %p33 = scmp.eq.s32.totalorder %s13, 0
    %p34 = por %p32, %p33
    %p35 = scmp.ne.s32.totalorder %s21, %s22
    %p36 = scmp.eq.s32.totalorder %s14, 2
    %p37 = por %p35, %p36
    %p39 = scmp.ne.s32.totalorder %s22, %s38
    %p40 = scmp.eq.s32.totalorder %s14, 0
    %p41 = por %p39, %p40
    %s43 = sadd.s32 %s42, 1
    %p46 = scmp.eq.s32.totalorder %s8, 2
    %p47 = scmp.ne.s32.totalorder %s42, %s44
    %p48 = scmp.eq.s32.totalorder %s8, 0
    %p49 = por %p47, %p48
    %p50 = scmp.ne.s32.totalorder %s42, %s44
    %p51 = scmp.eq.s32.totalorder %s13, 2
    %p52 = por %p50, %p51
    %p53 = scmp.ne.s32.totalorder %s44, %s45
    %p54 = scmp.eq.s32.totalorder %s13, 0
    %p55 = por %p53, %p54
    %p56 = scmp.ne.s32.totalorder %s44, %s45
    %p57 = scmp.eq.s32.totalorder %s14, 2
    %p58 = por %p56, %p57
    %p60 = scmp.ne.s32.totalorder %s45, %s59
    %p61 = scmp.eq.s32.totalorder %s14, 0
    %p62 = por %p60, %p61
    %s63 = ssub.s32 %s8, %s15
    %p64 = scmp.eq.s32.totalorder %s63, 0
    %s66 = sadd.s32 %s65, 1
    %s67 = scalar_select %p64, %s65, %s66
    %p70 = pneg %p64
    %p71 = scmp.eq.s32.totalorder %s8, 2
    %p72 = por %p70, %p71
    %p73 = scmp.ne.s32.totalorder %s65, %s68
    %p74 = scmp.eq.s32.totalorder %s8, 0
    %p75 = por %p73, %p74
    %p76 = scmp.ne.s32.totalorder %s65, %s68
    %p77 = scmp.eq.s32.totalorder %s13, 2
    %p78 = por %p76, %p77
    %p79 = scmp.ne.s32.totalorder %s68, %s69
    %p80 = scmp.eq.s32.totalorder %s13, 0
    %p81 = por %p79, %p80
    %p82 = scmp.ne.s32.totalorder %s68, %s69
    %p83 = scmp.eq.s32.totalorder %s14, 2
    %p84 = por %p82, %p83
    %p86 = scmp.ne.s32.totalorder %s69, %s85
    %p87 = scmp.eq.s32.totalorder %s14, 0
    %p88 = por %p86, %p87
    %p89 = scmp.le.s32.totalorder 1, %s8
    %p90 = scmp.lt.s32.totalorder %s8, 4
    %p91 = pnand %p89, %p90
    %p92 = pneg %p91
    // Predicated region
    $region9: #{_frequency_bias_forward.1} parent=5 // pred_check
      _
    $region10: #{_frequency_bias_forward.1} parent=5 // pred_check_branch
      %94 = sbr.rel (%p91) target = $region12
    $region11: #{_frequency_bias_forward.1} parent=5 // pred_region
      %s95 = ssub.s32 %s8, 1
      // Predicated region
      $region13: #{_frequency_bias_forward.1} parent=11 // pred_check
        %p96 = pneg %p55
      $region14: #{_frequency_bias_forward.1} parent=11 // pred_check_branch
        %98 = sbr.rel (%p96) target = $region16
      $region15: #{_frequency_bias_forward.1} parent=11 // pred_region
        _
      $region16: #{_frequency_bias_forward.1} parent=11 // pred_fallthru
        _
    $region12: #{_frequency_bias_forward.1} parent=5 // pred_fallthru
      _
    %p99 = scmp.lt.s32.totalorder %s8, 3
    // Predicated region
    $region17: #{_frequency_bias_forward.1} parent=5 // pred_check
      %p100 = pneg %p99
    $region18: #{_frequency_bias_forward.1} parent=5 // pred_check_branch
      %102 = sbr.rel (%p100) target = $region20
    $region19: #{_frequency_bias_forward.1} parent=5 // pred_region
      // Predicated region
      $region21: #{_frequency_bias_forward.1} parent=19 // pred_check
        %p103 = pneg %p28
      $region22: #{_frequency_bias_forward.1} parent=19 // pred_check_branch
        %105 = sbr.rel (%p103) target = $region24
      $region23: #{_frequency_bias_forward.1} parent=19 // pred_region
        %s106 = smul.u32 64, %s8
        %p107 = scmp.lt.s32.totalorder %s106, 191
        %s108 = scalar_select %p107, %s106, 191
        %s109 = smul.addr %s108, 8
        %s110 = scalar_lea.vmem %s0, %s109
        %s111 = smul.u32 64, %s8
      $region24: #{_frequency_bias_forward.1} parent=19 // pred_fallthru
        _
    $region20: #{_frequency_bias_forward.1} parent=5 // pred_fallthru
      _
    %p112 = scmp.le.s32.totalorder 1, %s8
    %p113 = scmp.lt.s32.totalorder %s8, 4
    %p114 = pnand %p112, %p113
    %p115 = pneg %p114
    // Predicated region
    $region25: #{_frequency_bias_forward.1} parent=5 // pred_check
      _
    $region26: #{_frequency_bias_forward.1} parent=5 // pred_check_branch
      %117 = sbr.rel (%p114) target = $region28
    $region27: #{_frequency_bias_forward.1} parent=5 // pred_region
      %s118 = ssub.s32 %s8, 1
      %s119 = smul.u32 64, %s13
      %p120 = scmp.lt.s32.totalorder %s119, 191
      %s121 = scalar_select %p120, %s119, 191
      %s122 = smul.addr %s121, 8
      %s123 = scalar_lea.vmem %s0, %s122
      %p124 = pneg %p34
      %p125 = pneg %p31
      %p126 = pneg %p55
      %p127 = pneg %p52
      %p128 = pneg %p81
      %p129 = pneg %p78
      %s130 = smul.u32 64, %s13
      %p131 = scmp.lt.s32.totalorder %s130, 191
      %s132 = scalar_select %p131, %s130, 191
      %s133 = smul.addr %s132, 8
      %s134 = scalar_lea.vmem %s2, %s133
      %s135 = smul.u32 64, %s13
      %p136 = scmp.lt.s32.totalorder %s135, 191
      %s137 = scalar_select %p136, %s135, 191
      %s138 = smul.addr %s137, 8
      %s139 = scalar_lea.vmem %s0, %s138
      %s140 = smul.u32 64, %s13
      %s141 = smul.u32 64, %s13
      %p142 = scmp.lt.s32.totalorder %s141, 191
      %s143 = scalar_select %p142, %s141, 191
      %s144 = smul.addr %s143, 8
      %s145 = scalar_lea.vmem %s2, %s144
      %s146 = smul.u32 64, %s13
      %v148 = vld [vmem:[%s139] sm:$0xff]
      %v149 = vld [vmem:[%s139 + $0x8] sm:$0xff]
      %v150 = vld [vmem:[%s139 + $0x10] sm:$0xff]
      %v151 = vld [vmem:[%s139 + $0x18] sm:$0xff]
      %v152 = vld [vmem:[%s139 + $0x20] sm:$0xff]
      %v153 = vld [vmem:[%s139 + $0x28] sm:$0xff]
      %v154 = vld [vmem:[%s139 + $0x30] sm:$0xff]
      %v155 = vld [vmem:[%s139 + $0x38] sm:$0xff]
      %v156 = vld [vmem:[%s139 + $0x40] sm:$0xff]
      %v157 = vld [vmem:[%s139 + $0x48] sm:$0xff]
      %v158 = vld [vmem:[%s139 + $0x50] sm:$0xff]
      %v159 = vld [vmem:[%s139 + $0x58] sm:$0xff]
      %v160 = vld [vmem:[%s139 + $0x60] sm:$0xff]
      %v161 = vld [vmem:[%s139 + $0x68] sm:$0xff]
      %v162 = vld [vmem:[%s139 + $0x70] sm:$0xff]
      %v163 = vld [vmem:[%s139 + $0x78] sm:$0xff]
      %v164 = vld [vmem:[%s139 + $0x80] sm:$0xff]
      %v165 = vld [vmem:[%s139 + $0x88] sm:$0xff]
      %v166 = vld [vmem:[%s139 + $0x90] sm:$0xff]
      %v167 = vld [vmem:[%s139 + $0x98] sm:$0xff]
      %v168 = vld [vmem:[%s139 + $0xa0] sm:$0xff]
      %v169 = vld [vmem:[%s139 + $0xa8] sm:$0xff]
      %v170 = vld [vmem:[%s139 + $0xb0] sm:$0xff]
      %v171 = vld [vmem:[%s139 + $0xb8] sm:$0xff]
      %v172 = vld [vmem:[%s139 + $0xc0] sm:$0xff]
      %v173 = vld [vmem:[%s139 + $0xc8] sm:$0xff]
      %v174 = vld [vmem:[%s139 + $0xd0] sm:$0xff]
      %v175 = vld [vmem:[%s139 + $0xd8] sm:$0xff]
      %v176 = vld [vmem:[%s139 + $0xe0] sm:$0xff]
      %v177 = vld [vmem:[%s139 + $0xe8] sm:$0xff]
      %v178 = vld [vmem:[%s139 + $0xf0] sm:$0xff]
      %v179 = vld [vmem:[%s139 + $0xf8] sm:$0xff]
      %v180 = vld [vmem:[%s139 + $0x100] sm:$0xff]
      %v181 = vld [vmem:[%s139 + $0x108] sm:$0xff]
      %v182 = vld [vmem:[%s139 + $0x110] sm:$0xff]
      %v183 = vld [vmem:[%s139 + $0x118] sm:$0xff]
      %v184 = vld [vmem:[%s139 + $0x120] sm:$0xff]
      %v185 = vld [vmem:[%s139 + $0x128] sm:$0xff]
      %v186 = vld [vmem:[%s139 + $0x130] sm:$0xff]
      %v187 = vld [vmem:[%s139 + $0x138] sm:$0xff]
      %v188 = vld [vmem:[%s139 + $0x140] sm:$0xff]
      %v189 = vld [vmem:[%s139 + $0x148] sm:$0xff]
      %v190 = vld [vmem:[%s139 + $0x150] sm:$0xff]
      %v191 = vld [vmem:[%s139 + $0x158] sm:$0xff]
      %v192 = vld [vmem:[%s139 + $0x160] sm:$0xff]
      %v193 = vld [vmem:[%s139 + $0x168] sm:$0xff]
      %v194 = vld [vmem:[%s139 + $0x170] sm:$0xff]
      %v195 = vld [vmem:[%s139 + $0x178] sm:$0xff]
      %v196 = vld [vmem:[%s139 + $0x180] sm:$0xff]
      %v197 = vld [vmem:[%s139 + $0x188] sm:$0xff]
      %v198 = vld [vmem:[%s139 + $0x190] sm:$0xff]
      %v199 = vld [vmem:[%s139 + $0x198] sm:$0xff]
      %v200 = vld [vmem:[%s139 + $0x1a0] sm:$0xff]
      %v201 = vld [vmem:[%s139 + $0x1a8] sm:$0xff]
      %v202 = vld [vmem:[%s139 + $0x1b0] sm:$0xff]
      %v203 = vld [vmem:[%s139 + $0x1b8] sm:$0xff]
      %v204 = vld [vmem:[%s139 + $0x1c0] sm:$0xff]
      %v205 = vld [vmem:[%s139 + $0x1c8] sm:$0xff]
      %v206 = vld [vmem:[%s139 + $0x1d0] sm:$0xff]
      %v207 = vld [vmem:[%s139 + $0x1d8] sm:$0xff]
      %v208 = vld [vmem:[%s139 + $0x1e0] sm:$0xff]
      %v209 = vld [vmem:[%s139 + $0x1e8] sm:$0xff]
      %v210 = vld [vmem:[%s139 + $0x1f0] sm:$0xff]
      %v211 = vld [vmem:[%s139 + $0x1f8] sm:$0xff]
      %v212 = vlaneseq
      %v213 = vand.u32 %v212, 127
      %v214 = vadd.s32 %v213, 128
      %215 = vset.pattern.permute.xlu0 0
      %216 = vperm.xlu0 %215, %v148
      %v217 = vpop.permute.xlu0 %216
      %218 = vset.pattern.permute.xlu0 0
      %219 = vperm.xlu0 %218, %v149
      %v220 = vpop.permute.xlu0 %219
      %221 = vset.pattern.permute.xlu0 0
      %222 = vperm.xlu0 %221, %v150
      %v223 = vpop.permute.xlu0 %222
      %224 = vset.pattern.permute.xlu0 0
      %225 = vperm.xlu0 %224, %v151
      %v226 = vpop.permute.xlu0 %225
      %227 = vset.pattern.permute.xlu0 0
      %228 = vperm.xlu0 %227, %v152
      %v229 = vpop.permute.xlu0 %228
      %230 = vset.pattern.permute.xlu0 0
      %231 = vperm.xlu0 %230, %v153
      %v232 = vpop.permute.xlu0 %231
      %233 = vset.pattern.permute.xlu0 0
      %234 = vperm.xlu0 %233, %v154
      %v235 = vpop.permute.xlu0 %234
      %236 = vset.pattern.permute.xlu0 0
      %237 = vperm.xlu0 %236, %v155
      %v238 = vpop.permute.xlu0 %237
      %239 = vset.pattern.permute.xlu0 0
      %240 = vperm.xlu0 %239, %v156
      %v241 = vpop.permute.xlu0 %240
      %242 = vset.pattern.permute.xlu0 0
      %243 = vperm.xlu0 %242, %v157
      %v244 = vpop.permute.xlu0 %243
      %245 = vset.pattern.permute.xlu0 0
      %246 = vperm.xlu0 %245, %v158
      %v247 = vpop.permute.xlu0 %246
      %248 = vset.pattern.permute.xlu0 0
      %249 = vperm.xlu0 %248, %v159
      %v250 = vpop.permute.xlu0 %249
      %251 = vset.pattern.permute.xlu0 0
      %252 = vperm.xlu0 %251, %v160
      %v253 = vpop.permute.xlu0 %252
      %254 = vset.pattern.permute.xlu0 0
      %255 = vperm.xlu0 %254, %v161
      %v256 = vpop.permute.xlu0 %255
      %257 = vset.pattern.permute.xlu0 0
      %258 = vperm.xlu0 %257, %v162
      %v259 = vpop.permute.xlu0 %258
      %260 = vset.pattern.permute.xlu0 0
      %261 = vperm.xlu0 %260, %v163
      %v262 = vpop.permute.xlu0 %261
      %263 = vset.pattern.permute.xlu0 0
      %264 = vperm.xlu0 %263, %v164
      %v265 = vpop.permute.xlu0 %264
      %266 = vset.pattern.permute.xlu0 0
      %267 = vperm.xlu0 %266, %v165
      %v268 = vpop.permute.xlu0 %267
      %269 = vset.pattern.permute.xlu0 0
      %270 = vperm.xlu0 %269, %v166
      %v271 = vpop.permute.xlu0 %270
      %272 = vset.pattern.permute.xlu0 0
      %273 = vperm.xlu0 %272, %v167
      %v274 = vpop.permute.xlu0 %273
      %275 = vset.pattern.permute.xlu0 0
      %276 = vperm.xlu0 %275, %v168
      %v277 = vpop.permute.xlu0 %276
      %278 = vset.pattern.permute.xlu0 0
      %279 = vperm.xlu0 %278, %v169
      %v280 = vpop.permute.xlu0 %279
      %281 = vset.pattern.permute.xlu0 0
      %282 = vperm.xlu0 %281, %v170
      %v283 = vpop.permute.xlu0 %282
      %284 = vset.pattern.permute.xlu0 0
      %285 = vperm.xlu0 %284, %v171
      %v286 = vpop.permute.xlu0 %285
      %287 = vset.pattern.permute.xlu0 0
      %288 = vperm.xlu0 %287, %v172
      %v289 = vpop.permute.xlu0 %288
      %290 = vset.pattern.permute.xlu0 0
      %291 = vperm.xlu0 %290, %v173
      %v292 = vpop.permute.xlu0 %291
      %293 = vset.pattern.permute.xlu0 0
      %294 = vperm.xlu0 %293, %v174
      %v295 = vpop.permute.xlu0 %294
      %296 = vset.pattern.permute.xlu0 0
      %297 = vperm.xlu0 %296, %v175
      %v298 = vpop.permute.xlu0 %297
      %299 = vset.pattern.permute.xlu0 0
      %300 = vperm.xlu0 %299, %v176
      %v301 = vpop.permute.xlu0 %300
      %302 = vset.pattern.permute.xlu0 0
      %303 = vperm.xlu0 %302, %v177
      %v304 = vpop.permute.xlu0 %303
      %305 = vset.pattern.permute.xlu0 0
      %306 = vperm.xlu0 %305, %v178
      %v307 = vpop.permute.xlu0 %306
      %308 = vset.pattern.permute.xlu0 0
      %309 = vperm.xlu0 %308, %v179
      %v310 = vpop.permute.xlu0 %309
      %311 = vset.pattern.permute.xlu0 0
      %312 = vperm.xlu0 %311, %v180
      %v313 = vpop.permute.xlu0 %312
      %314 = vset.pattern.permute.xlu0 0
      %315 = vperm.xlu0 %314, %v181
      %v316 = vpop.permute.xlu0 %315
      %317 = vset.pattern.permute.xlu0 0
      %318 = vperm.xlu0 %317, %v182
      %v319 = vpop.permute.xlu0 %318
      %320 = vset.pattern.permute.xlu0 0
      %321 = vperm.xlu0 %320, %v183
      %v322 = vpop.permute.xlu0 %321
      %323 = vset.pattern.permute.xlu0 0
      %324 = vperm.xlu0 %323, %v184
      %v325 = vpop.permute.xlu0 %324
      %326 = vset.pattern.permute.xlu0 0
      %327 = vperm.xlu0 %326, %v185
      %v328 = vpop.permute.xlu0 %327
      %329 = vset.pattern.permute.xlu0 0
      %330 = vperm.xlu0 %329, %v186
      %v331 = vpop.permute.xlu0 %330
      %332 = vset.pattern.permute.xlu0 0
      %333 = vperm.xlu0 %332, %v187
      %v334 = vpop.permute.xlu0 %333
      %335 = vset.pattern.permute.xlu0 0
      %336 = vperm.xlu0 %335, %v188
      %v337 = vpop.permute.xlu0 %336
      %338 = vset.pattern.permute.xlu0 0
      %339 = vperm.xlu0 %338, %v189
      %v340 = vpop.permute.xlu0 %339
      %341 = vset.pattern.permute.xlu0 0
      %342 = vperm.xlu0 %341, %v190
      %v343 = vpop.permute.xlu0 %342
      %344 = vset.pattern.permute.xlu0 0
      %345 = vperm.xlu0 %344, %v191
      %v346 = vpop.permute.xlu0 %345
      %347 = vset.pattern.permute.xlu0 0
      %348 = vperm.xlu0 %347, %v192
      %v349 = vpop.permute.xlu0 %348
      %350 = vset.pattern.permute.xlu0 0
      %351 = vperm.xlu0 %350, %v193
      %v352 = vpop.permute.xlu0 %351
      %353 = vset.pattern.permute.xlu0 0
      %354 = vperm.xlu0 %353, %v194
      %v355 = vpop.permute.xlu0 %354
      %356 = vset.pattern.permute.xlu0 0
      %357 = vperm.xlu0 %356, %v195
      %v358 = vpop.permute.xlu0 %357
      %359 = vset.pattern.permute.xlu0 0
      %360 = vperm.xlu0 %359, %v196
      %v361 = vpop.permute.xlu0 %360
      %362 = vset.pattern.permute.xlu0 0
      %363 = vperm.xlu0 %362, %v197
      %v364 = vpop.permute.xlu0 %363
      %365 = vset.pattern.permute.xlu0 0
      %366 = vperm.xlu0 %365, %v198
      %v367 = vpop.permute.xlu0 %366
      %368 = vset.pattern.permute.xlu0 0
      %369 = vperm.xlu0 %368, %v199
      %v370 = vpop.permute.xlu0 %369
      %371 = vset.pattern.permute.xlu0 0
      %372 = vperm.xlu0 %371, %v200
      %v373 = vpop.permute.xlu0 %372
      %374 = vset.pattern.permute.xlu0 0
      %375 = vperm.xlu0 %374, %v201
      %v376 = vpop.permute.xlu0 %375
      %377 = vset.pattern.permute.xlu0 0
      %378 = vperm.xlu0 %377, %v202
      %v379 = vpop.permute.xlu0 %378
      %380 = vset.pattern.permute.xlu0 0
      %381 = vperm.xlu0 %380, %v203
      %v382 = vpop.permute.xlu0 %381
      %383 = vset.pattern.permute.xlu0 0
      %384 = vperm.xlu0 %383, %v204
      %v385 = vpop.permute.xlu0 %384
      %386 = vset.pattern.permute.xlu0 0
      %387 = vperm.xlu0 %386, %v205
      %v388 = vpop.permute.xlu0 %387
      %389 = vset.pattern.permute.xlu0 0
      %390 = vperm.xlu0 %389, %v206
      %v391 = vpop.permute.xlu0 %390
      %392 = vset.pattern.permute.xlu0 0
      %393 = vperm.xlu0 %392, %v207
      %v394 = vpop.permute.xlu0 %393
      %395 = vset.pattern.permute.xlu0 0
      %396 = vperm.xlu0 %395, %v208
      %v397 = vpop.permute.xlu0 %396
      %398 = vset.pattern.permute.xlu0 0
      %399 = vperm.xlu0 %398, %v209
      %v400 = vpop.permute.xlu0 %399
      %401 = vset.pattern.permute.xlu0 0
      %402 = vperm.xlu0 %401, %v210
      %v403 = vpop.permute.xlu0 %402
      %404 = vset.pattern.permute.xlu0 0
      %405 = vperm.xlu0 %404, %v211
      %v406 = vpop.permute.xlu0 %405
      %vm407 = vcmp.eq.s32.totalorder %v213, %v217
      %vm408 = vcmp.eq.s32.totalorder %v214, %v217
      %vm409 = vcmp.eq.s32.totalorder %v213, %v220
      %vm410 = vcmp.eq.s32.totalorder %v214, %v220
      %vm411 = vcmp.eq.s32.totalorder %v213, %v223
      %vm412 = vcmp.eq.s32.totalorder %v214, %v223
      %vm413 = vcmp.eq.s32.totalorder %v213, %v226
      %vm414 = vcmp.eq.s32.totalorder %v214, %v226
      %vm415 = vcmp.eq.s32.totalorder %v213, %v229
      %vm416 = vcmp.eq.s32.totalorder %v214, %v229
      %vm417 = vcmp.eq.s32.totalorder %v213, %v232
      %vm418 = vcmp.eq.s32.totalorder %v214, %v232
      %vm419 = vcmp.eq.s32.totalorder %v213, %v235
      %vm420 = vcmp.eq.s32.totalorder %v214, %v235
      %vm421 = vcmp.eq.s32.totalorder %v213, %v238
      %vm422 = vcmp.eq.s32.totalorder %v214, %v238
      %vm423 = vcmp.eq.s32.totalorder %v213, %v241
      %vm424 = vcmp.eq.s32.totalorder %v214, %v241
      %vm425 = vcmp.eq.s32.totalorder %v213, %v244
      %vm426 = vcmp.eq.s32.totalorder %v214, %v244
      %vm427 = vcmp.eq.s32.totalorder %v213, %v247
      %vm428 = vcmp.eq.s32.totalorder %v214, %v247
      %vm429 = vcmp.eq.s32.totalorder %v213, %v250
      %vm430 = vcmp.eq.s32.totalorder %v214, %v250
      %vm431 = vcmp.eq.s32.totalorder %v213, %v253
      %vm432 = vcmp.eq.s32.totalorder %v214, %v253
      %vm433 = vcmp.eq.s32.totalorder %v213, %v256
      %vm434 = vcmp.eq.s32.totalorder %v214, %v256
      %vm435 = vcmp.eq.s32.totalorder %v213, %v259
      %vm436 = vcmp.eq.s32.totalorder %v214, %v259
      %vm437 = vcmp.eq.s32.totalorder %v213, %v262
      %vm438 = vcmp.eq.s32.totalorder %v214, %v262
      %vm439 = vcmp.eq.s32.totalorder %v213, %v265
      %vm440 = vcmp.eq.s32.totalorder %v214, %v265
      %vm441 = vcmp.eq.s32.totalorder %v213, %v268
      %vm442 = vcmp.eq.s32.totalorder %v214, %v268
      %vm443 = vcmp.eq.s32.totalorder %v213, %v271
      %vm444 = vcmp.eq.s32.totalorder %v214, %v271
      %vm445 = vcmp.eq.s32.totalorder %v213, %v274
      %vm446 = vcmp.eq.s32.totalorder %v214, %v274
      %vm447 = vcmp.eq.s32.totalorder %v213, %v277
      %vm448 = vcmp.eq.s32.totalorder %v214, %v277
      %vm449 = vcmp.eq.s32.totalorder %v213, %v280
      %vm450 = vcmp.eq.s32.totalorder %v214, %v280
      %vm451 = vcmp.eq.s32.totalorder %v213, %v283
      %vm452 = vcmp.eq.s32.totalorder %v214, %v283
      %vm453 = vcmp.eq.s32.totalorder %v213, %v286
      %vm454 = vcmp.eq.s32.totalorder %v214, %v286
      %vm455 = vcmp.eq.s32.totalorder %v213, %v289
      %vm456 = vcmp.eq.s32.totalorder %v214, %v289
      %vm457 = vcmp.eq.s32.totalorder %v213, %v292
      %vm458 = vcmp.eq.s32.totalorder %v214, %v292
      %vm459 = vcmp.eq.s32.totalorder %v213, %v295
      %vm460 = vcmp.eq.s32.totalorder %v214, %v295
      %vm461 = vcmp.eq.s32.totalorder %v213, %v298
      %vm462 = vcmp.eq.s32.totalorder %v214, %v298
      %vm463 = vcmp.eq.s32.totalorder %v213, %v301
      %vm464 = vcmp.eq.s32.totalorder %v214, %v301
      %vm465 = vcmp.eq.s32.totalorder %v213, %v304
      %vm466 = vcmp.eq.s32.totalorder %v214, %v304
      %vm467 = vcmp.eq.s32.totalorder %v213, %v307
      %vm468 = vcmp.eq.s32.totalorder %v214, %v307
      %vm469 = vcmp.eq.s32.totalorder %v213, %v310
      %vm470 = vcmp.eq.s32.totalorder %v214, %v310
      %vm471 = vcmp.eq.s32.totalorder %v213, %v313
      %vm472 = vcmp.eq.s32.totalorder %v214, %v313
      %vm473 = vcmp.eq.s32.totalorder %v213, %v316
      %vm474 = vcmp.eq.s32.totalorder %v214, %v316
      %vm475 = vcmp.eq.s32.totalorder %v213, %v319
      %vm476 = vcmp.eq.s32.totalorder %v214, %v319
      %vm477 = vcmp.eq.s32.totalorder %v213, %v322
      %vm478 = vcmp.eq.s32.totalorder %v214, %v322
      %vm479 = vcmp.eq.s32.totalorder %v213, %v325
      %vm480 = vcmp.eq.s32.totalorder %v214, %v325
      %vm481 = vcmp.eq.s32.totalorder %v213, %v328
      %vm482 = vcmp.eq.s32.totalorder %v214, %v328
      %vm483 = vcmp.eq.s32.totalorder %v213, %v331
      %vm484 = vcmp.eq.s32.totalorder %v214, %v331
      %vm485 = vcmp.eq.s32.totalorder %v213, %v334
      %vm486 = vcmp.eq.s32.totalorder %v214, %v334
      %vm487 = vcmp.eq.s32.totalorder %v213, %v337
      %vm488 = vcmp.eq.s32.totalorder %v214, %v337
      %vm489 = vcmp.eq.s32.totalorder %v213, %v340
      %vm490 = vcmp.eq.s32.totalorder %v214, %v340
      %vm491 = vcmp.eq.s32.totalorder %v213, %v343
      %vm492 = vcmp.eq.s32.totalorder %v214, %v343
      %vm493 = vcmp.eq.s32.totalorder %v213, %v346
      %vm494 = vcmp.eq.s32.totalorder %v214, %v346
      %vm495 = vcmp.eq.s32.totalorder %v213, %v349
      %vm496 = vcmp.eq.s32.totalorder %v214, %v349
      %vm497 = vcmp.eq.s32.totalorder %v213, %v352
      %vm498 = vcmp.eq.s32.totalorder %v214, %v352
      %vm499 = vcmp.eq.s32.totalorder %v213, %v355
      %vm500 = vcmp.eq.s32.totalorder %v214, %v355
      %vm501 = vcmp.eq.s32.totalorder %v213, %v358
      %vm502 = vcmp.eq.s32.totalorder %v214, %v358
      %vm503 = vcmp.eq.s32.totalorder %v213, %v361
      %vm504 = vcmp.eq.s32.totalorder %v214, %v361
      %vm505 = vcmp.eq.s32.totalorder %v213, %v364
      %vm506 = vcmp.eq.s32.totalorder %v214, %v364
      %vm507 = vcmp.eq.s32.totalorder %v213, %v367
      %vm508 = vcmp.eq.s32.totalorder %v214, %v367
      %vm509 = vcmp.eq.s32.totalorder %v213, %v370
      %vm510 = vcmp.eq.s32.totalorder %v214, %v370
      %vm511 = vcmp.eq.s32.totalorder %v213, %v373
      %vm512 = vcmp.eq.s32.totalorder %v214, %v373
      %vm513 = vcmp.eq.s32.totalorder %v213, %v376
      %vm514 = vcmp.eq.s32.totalorder %v214, %v376
      %vm515 = vcmp.eq.s32.totalorder %v213, %v379
      %vm516 = vcmp.eq.s32.totalorder %v214, %v379
      %vm517 = vcmp.eq.s32.totalorder %v213, %v382
      %vm518 = vcmp.eq.s32.totalorder %v214, %v382
      %vm519 = vcmp.eq.s32.totalorder %v213, %v385
      %vm520 = vcmp.eq.s32.totalorder %v214, %v385
      %vm521 = vcmp.eq.s32.totalorder %v213, %v388
      %vm522 = vcmp.eq.s32.totalorder %v214, %v388
      %vm523 = vcmp.eq.s32.totalorder %v213, %v391
      %vm524 = vcmp.eq.s32.totalorder %v214, %v391
      %vm525 = vcmp.eq.s32.totalorder %v213, %v394
      %vm526 = vcmp.eq.s32.totalorder %v214, %v394
      %vm527 = vcmp.eq.s32.totalorder %v213, %v397
      %vm528 = vcmp.eq.s32.totalorder %v214, %v397
      %vm529 = vcmp.eq.s32.totalorder %v213, %v400
      %vm530 = vcmp.eq.s32.totalorder %v214, %v400
      %vm531 = vcmp.eq.s32.totalorder %v213, %v403
      %vm532 = vcmp.eq.s32.totalorder %v214, %v403
      %vm533 = vcmp.eq.s32.totalorder %v213, %v406
      %vm534 = vcmp.eq.s32.totalorder %v214, %v406
      %v535 = vsel %vm407, 1, 0
      %v536 = vsel %vm408, 1, 0
      %v537 = vsel %vm409, 1, 0
      %v538 = vsel %vm410, 1, 0
      %v539 = vsel %vm411, 1, 0
      %v540 = vsel %vm412, 1, 0
      %v541 = vsel %vm413, 1, 0
      %v542 = vsel %vm414, 1, 0
      %v543 = vsel %vm415, 1, 0
      %v544 = vsel %vm416, 1, 0
      %v545 = vsel %vm417, 1, 0
      %v546 = vsel %vm418, 1, 0
      %v547 = vsel %vm419, 1, 0
      %v548 = vsel %vm420, 1, 0
      %v549 = vsel %vm421, 1, 0
      %v550 = vsel %vm422, 1, 0
      %v551 = vsel %vm423, 1, 0
      %v552 = vsel %vm424, 1, 0
      %v553 = vsel %vm425, 1, 0
      %v554 = vsel %vm426, 1, 0
      %v555 = vsel %vm427, 1, 0
      %v556 = vsel %vm428, 1, 0
      %v557 = vsel %vm429, 1, 0
      %v558 = vsel %vm430, 1, 0
      %v559 = vsel %vm431, 1, 0
      %v560 = vsel %vm432, 1, 0
      %v561 = vsel %vm433, 1, 0
      %v562 = vsel %vm434, 1, 0
      %v563 = vsel %vm435, 1, 0
      %v564 = vsel %vm436, 1, 0
      %v565 = vsel %vm437, 1, 0
      %v566 = vsel %vm438, 1, 0
      %v567 = vsel %vm439, 1, 0
      %v568 = vsel %vm440, 1, 0
      %v569 = vsel %vm441, 1, 0
      %v570 = vsel %vm442, 1, 0
      %v571 = vsel %vm443, 1, 0
      %v572 = vsel %vm444, 1, 0
      %v573 = vsel %vm445, 1, 0
      %v574 = vsel %vm446, 1, 0
      %v575 = vsel %vm447, 1, 0
      %v576 = vsel %vm448, 1, 0
      %v577 = vsel %vm449, 1, 0
      %v578 = vsel %vm450, 1, 0
      %v579 = vsel %vm451, 1, 0
      %v580 = vsel %vm452, 1, 0
      %v581 = vsel %vm453, 1, 0
      %v582 = vsel %vm454, 1, 0
      %v583 = vsel %vm455, 1, 0
      %v584 = vsel %vm456, 1, 0
      %v585 = vsel %vm457, 1, 0
      %v586 = vsel %vm458, 1, 0
      %v587 = vsel %vm459, 1, 0
      %v588 = vsel %vm460, 1, 0
      %v589 = vsel %vm461, 1, 0
      %v590 = vsel %vm462, 1, 0
      %v591 = vsel %vm463, 1, 0
      %v592 = vsel %vm464, 1, 0
      %v593 = vsel %vm465, 1, 0
      %v594 = vsel %vm466, 1, 0
      %v595 = vsel %vm467, 1, 0
      %v596 = vsel %vm468, 1, 0
      %v597 = vsel %vm469, 1, 0
      %v598 = vsel %vm470, 1, 0
      %v599 = vsel %vm471, 1, 0
      %v600 = vsel %vm472, 1, 0
      %v601 = vsel %vm473, 1, 0
      %v602 = vsel %vm474, 1, 0
      %v603 = vsel %vm475, 1, 0
      %v604 = vsel %vm476, 1, 0
      %v605 = vsel %vm477, 1, 0
      %v606 = vsel %vm478, 1, 0
      %v607 = vsel %vm479, 1, 0
      %v608 = vsel %vm480, 1, 0
      %v609 = vsel %vm481, 1, 0
      %v610 = vsel %vm482, 1, 0
      %v611 = vsel %vm483, 1, 0
      %v612 = vsel %vm484, 1, 0
      %v613 = vsel %vm485, 1, 0
      %v614 = vsel %vm486, 1, 0
      %v615 = vsel %vm487, 1, 0
      %v616 = vsel %vm488, 1, 0
      %v617 = vsel %vm489, 1, 0
      %v618 = vsel %vm490, 1, 0
      %v619 = vsel %vm491, 1, 0
      %v620 = vsel %vm492, 1, 0
      %v621 = vsel %vm493, 1, 0
      %v622 = vsel %vm494, 1, 0
      %v623 = vsel %vm495, 1, 0
      %v624 = vsel %vm496, 1, 0
      %v625 = vsel %vm497, 1, 0
      %v626 = vsel %vm498, 1, 0
      %v627 = vsel %vm499, 1, 0
      %v628 = vsel %vm500, 1, 0
      %v629 = vsel %vm501, 1, 0
      %v630 = vsel %vm502, 1, 0
      %v631 = vsel %vm503, 1, 0
      %v632 = vsel %vm504, 1, 0
      %v633 = vsel %vm505, 1, 0
      %v634 = vsel %vm506, 1, 0
      %v635 = vsel %vm507, 1, 0
      %v636 = vsel %vm508, 1, 0
      %v637 = vsel %vm509, 1, 0
      %v638 = vsel %vm510, 1, 0
      %v639 = vsel %vm511, 1, 0
      %v640 = vsel %vm512, 1, 0
      %v641 = vsel %vm513, 1, 0
      %v642 = vsel %vm514, 1, 0
      %v643 = vsel %vm515, 1, 0
      %v644 = vsel %vm516, 1, 0
      %v645 = vsel %vm517, 1, 0
      %v646 = vsel %vm518, 1, 0
      %v647 = vsel %vm519, 1, 0
      %v648 = vsel %vm520, 1, 0
      %v649 = vsel %vm521, 1, 0
      %v650 = vsel %vm522, 1, 0
      %v651 = vsel %vm523, 1, 0
      %v652 = vsel %vm524, 1, 0
      %v653 = vsel %vm525, 1, 0
      %v654 = vsel %vm526, 1, 0
      %v655 = vsel %vm527, 1, 0
      %v656 = vsel %vm528, 1, 0
      %v657 = vsel %vm529, 1, 0
      %v658 = vsel %vm530, 1, 0
      %v659 = vsel %vm531, 1, 0
      %v660 = vsel %vm532, 1, 0
      %v661 = vsel %vm533, 1, 0
      %v662 = vsel %vm534, 1, 0
      %v663 = vcvt.s32.f32 %v535
      %v664 = vcvt.s32.f32 %v536
      %v665 = vcvt.s32.f32 %v537
      %v666 = vcvt.s32.f32 %v538
      %v667 = vcvt.s32.f32 %v539
      %v668 = vcvt.s32.f32 %v540
      %v669 = vcvt.s32.f32 %v541
      %v670 = vcvt.s32.f32 %v542
      %v671 = vcvt.s32.f32 %v543
      %v672 = vcvt.s32.f32 %v544
      %v673 = vcvt.s32.f32 %v545
      %v674 = vcvt.s32.f32 %v546
      %v675 = vcvt.s32.f32 %v547
      %v676 = vcvt.s32.f32 %v548
      %v677 = vcvt.s32.f32 %v549
      %v678 = vcvt.s32.f32 %v550
      %v679 = vcvt.s32.f32 %v551
      %v680 = vcvt.s32.f32 %v552
      %v681 = vcvt.s32.f32 %v553
      %v682 = vcvt.s32.f32 %v554
      %v683 = vcvt.s32.f32 %v555
      %v684 = vcvt.s32.f32 %v556
      %v685 = vcvt.s32.f32 %v557
      %v686 = vcvt.s32.f32 %v558
      %v687 = vcvt.s32.f32 %v559
      %v688 = vcvt.s32.f32 %v560
      %v689 = vcvt.s32.f32 %v561
      %v690 = vcvt.s32.f32 %v562
      %v691 = vcvt.s32.f32 %v563
      %v692 = vcvt.s32.f32 %v564
      %v693 = vcvt.s32.f32 %v565
      %v694 = vcvt.s32.f32 %v566
      %v695 = vcvt.s32.f32 %v567
      %v696 = vcvt.s32.f32 %v568
      %v697 = vcvt.s32.f32 %v569
      %v698 = vcvt.s32.f32 %v570
      %v699 = vcvt.s32.f32 %v571
      %v700 = vcvt.s32.f32 %v572
      %v701 = vcvt.s32.f32 %v573
      %v702 = vcvt.s32.f32 %v574
      %v703 = vcvt.s32.f32 %v575
      %v704 = vcvt.s32.f32 %v576
      %v705 = vcvt.s32.f32 %v577
      %v706 = vcvt.s32.f32 %v578
      %v707 = vcvt.s32.f32 %v579
      %v708 = vcvt.s32.f32 %v580
      %v709 = vcvt.s32.f32 %v581
      %v710 = vcvt.s32.f32 %v582
      %v711 = vcvt.s32.f32 %v583
      %v712 = vcvt.s32.f32 %v584
      %v713 = vcvt.s32.f32 %v585
      %v714 = vcvt.s32.f32 %v586
      %v715 = vcvt.s32.f32 %v587
      %v716 = vcvt.s32.f32 %v588
      %v717 = vcvt.s32.f32 %v589
      %v718 = vcvt.s32.f32 %v590
      %v719 = vcvt.s32.f32 %v591
      %v720 = vcvt.s32.f32 %v592
      %v721 = vcvt.s32.f32 %v593
      %v722 = vcvt.s32.f32 %v594
      %v723 = vcvt.s32.f32 %v595
      %v724 = vcvt.s32.f32 %v596
      %v725 = vcvt.s32.f32 %v597
      %v726 = vcvt.s32.f32 %v598
      %v727 = vcvt.s32.f32 %v599
      %v728 = vcvt.s32.f32 %v600
      %v729 = vcvt.s32.f32 %v601
      %v730 = vcvt.s32.f32 %v602
      %v731 = vcvt.s32.f32 %v603
      %v732 = vcvt.s32.f32 %v604
      %v733 = vcvt.s32.f32 %v605
      %v734 = vcvt.s32.f32 %v606
      %v735 = vcvt.s32.f32 %v607
      %v736 = vcvt.s32.f32 %v608
      %v737 = vcvt.s32.f32 %v609
      %v738 = vcvt.s32.f32 %v610
      %v739 = vcvt.s32.f32 %v611
      %v740 = vcvt.s32.f32 %v612
      %v741 = vcvt.s32.f32 %v613
      %v742 = vcvt.s32.f32 %v614
      %v743 = vcvt.s32.f32 %v615
      %v744 = vcvt.s32.f32 %v616
      %v745 = vcvt.s32.f32 %v617
      %v746 = vcvt.s32.f32 %v618
      %v747 = vcvt.s32.f32 %v619
      %v748 = vcvt.s32.f32 %v620
      %v749 = vcvt.s32.f32 %v621
      %v750 = vcvt.s32.f32 %v622
      %v751 = vcvt.s32.f32 %v623
      %v752 = vcvt.s32.f32 %v624
      %v753 = vcvt.s32.f32 %v625
      %v754 = vcvt.s32.f32 %v626
      %v755 = vcvt.s32.f32 %v627
      %v756 = vcvt.s32.f32 %v628
      %v757 = vcvt.s32.f32 %v629
      %v758 = vcvt.s32.f32 %v630
      %v759 = vcvt.s32.f32 %v631
      %v760 = vcvt.s32.f32 %v632
      %v761 = vcvt.s32.f32 %v633
      %v762 = vcvt.s32.f32 %v634
      %v763 = vcvt.s32.f32 %v635
      %v764 = vcvt.s32.f32 %v636
      %v765 = vcvt.s32.f32 %v637
      %v766 = vcvt.s32.f32 %v638
      %v767 = vcvt.s32.f32 %v639
      %v768 = vcvt.s32.f32 %v640
      %v769 = vcvt.s32.f32 %v641
      %v770 = vcvt.s32.f32 %v642
      %v771 = vcvt.s32.f32 %v643
      %v772 = vcvt.s32.f32 %v644
      %v773 = vcvt.s32.f32 %v645
      %v774 = vcvt.s32.f32 %v646
      %v775 = vcvt.s32.f32 %v647
      %v776 = vcvt.s32.f32 %v648
      %v777 = vcvt.s32.f32 %v649
      %v778 = vcvt.s32.f32 %v650
      %v779 = vcvt.s32.f32 %v651
      %v780 = vcvt.s32.f32 %v652
      %v781 = vcvt.s32.f32 %v653
      %v782 = vcvt.s32.f32 %v654
      %v783 = vcvt.s32.f32 %v655
      %v784 = vcvt.s32.f32 %v656
      %v785 = vcvt.s32.f32 %v657
      %v786 = vcvt.s32.f32 %v658
      %v787 = vcvt.s32.f32 %v659
      %v788 = vcvt.s32.f32 %v660
      %v789 = vcvt.s32.f32 %v661
      %v790 = vcvt.s32.f32 %v662
      %v791 = vpack.c.bf16 %v665, %v663
      %v792 = vpack.c.bf16 %v666, %v664
      %v793 = vpack.c.bf16 %v669, %v667
      %v794 = vpack.c.bf16 %v670, %v668
      %v795 = vpack.c.bf16 %v673, %v671
      %v796 = vpack.c.bf16 %v674, %v672
      %v797 = vpack.c.bf16 %v677, %v675
      %v798 = vpack.c.bf16 %v678, %v676
      %v799 = vpack.c.bf16 %v681, %v679
      %v800 = vpack.c.bf16 %v682, %v680
      %v801 = vpack.c.bf16 %v685, %v683
      %v802 = vpack.c.bf16 %v686, %v684
      %v803 = vpack.c.bf16 %v689, %v687
      %v804 = vpack.c.bf16 %v690, %v688
      %v805 = vpack.c.bf16 %v693, %v691
      %v806 = vpack.c.bf16 %v694, %v692
      %v807 = vpack.c.bf16 %v697, %v695
      %v808 = vpack.c.bf16 %v698, %v696
      %v809 = vpack.c.bf16 %v701, %v699
      %v810 = vpack.c.bf16 %v702, %v700
      %v811 = vpack.c.bf16 %v705, %v703
      %v812 = vpack.c.bf16 %v706, %v704
      %v813 = vpack.c.bf16 %v709, %v707
      %v814 = vpack.c.bf16 %v710, %v708
      %v815 = vpack.c.bf16 %v713, %v711
      %v816 = vpack.c.bf16 %v714, %v712
      %v817 = vpack.c.bf16 %v717, %v715
      %v818 = vpack.c.bf16 %v718, %v716
      %v819 = vpack.c.bf16 %v721, %v719
      %v820 = vpack.c.bf16 %v722, %v720
      %v821 = vpack.c.bf16 %v725, %v723
      %v822 = vpack.c.bf16 %v726, %v724
      %v823 = vpack.c.bf16 %v729, %v727
      %v824 = vpack.c.bf16 %v730, %v728
      %v825 = vpack.c.bf16 %v733, %v731
      %v826 = vpack.c.bf16 %v734, %v732
      %v827 = vpack.c.bf16 %v737, %v735
      %v828 = vpack.c.bf16 %v738, %v736
      %v829 = vpack.c.bf16 %v741, %v739
      %v830 = vpack.c.bf16 %v742, %v740
      %v831 = vpack.c.bf16 %v745, %v743
      %v832 = vpack.c.bf16 %v746, %v744
      %v833 = vpack.c.bf16 %v749, %v747
      %v834 = vpack.c.bf16 %v750, %v748
      %v835 = vpack.c.bf16 %v753, %v751
      %v836 = vpack.c.bf16 %v754, %v752
      %v837 = vpack.c.bf16 %v757, %v755
      %v838 = vpack.c.bf16 %v758, %v756
      %v839 = vpack.c.bf16 %v761, %v759
      %v840 = vpack.c.bf16 %v762, %v760
      %v841 = vpack.c.bf16 %v765, %v763
      %v842 = vpack.c.bf16 %v766, %v764
      %v843 = vpack.c.bf16 %v769, %v767
      %v844 = vpack.c.bf16 %v770, %v768
      %v845 = vpack.c.bf16 %v773, %v771
      %v846 = vpack.c.bf16 %v774, %v772
      %v847 = vpack.c.bf16 %v777, %v775
      %v848 = vpack.c.bf16 %v778, %v776
      %v849 = vpack.c.bf16 %v781, %v779
      %v850 = vpack.c.bf16 %v782, %v780
      %v851 = vpack.c.bf16 %v785, %v783
      %v852 = vpack.c.bf16 %v786, %v784
      %v853 = vpack.c.bf16 %v789, %v787
      %v854 = vpack.c.bf16 %v790, %v788
      %v855 = vld [vmem:[%s1] sm:$0xff]
      %v856 = vld [vmem:[%s1 + $0x8] sm:$0xf]
      %v857 = vld [vmem:[%s1 + $0xc] sm:$0xff]
      %v858 = vld [vmem:[%s1 + $0x14] sm:$0xf]
      %v859 = vld [vmem:[%s1 + $0x18] sm:$0xff]
      %v860 = vld [vmem:[%s1 + $0x20] sm:$0xf]
      %v861 = vld [vmem:[%s1 + $0x24] sm:$0xff]
      %v862 = vld [vmem:[%s1 + $0x2c] sm:$0xf]
      %v863 = vld [vmem:[%s1 + $0x30] sm:$0xff]
      %v864 = vld [vmem:[%s1 + $0x38] sm:$0xf]
      %v865 = vld [vmem:[%s1 + $0x3c] sm:$0xff]
      %v866 = vld [vmem:[%s1 + $0x44] sm:$0xf]
      %v867 = vld [vmem:[%s1 + $0x48] sm:$0xff]
      %v868 = vld [vmem:[%s1 + $0x50] sm:$0xf]
      %v869 = vld [vmem:[%s1 + $0x54] sm:$0xff]
      %v870 = vld [vmem:[%s1 + $0x5c] sm:$0xf]
      %v871 = vld [vmem:[%s1 + $0x60] sm:$0xff]
      %v872 = vld [vmem:[%s1 + $0x68] sm:$0xf]
      %v873 = vld [vmem:[%s1 + $0x6c] sm:$0xff]
      %v874 = vld [vmem:[%s1 + $0x74] sm:$0xf]
      %v875 = vld [vmem:[%s1 + $0x78] sm:$0xff]
      %v876 = vld [vmem:[%s1 + $0x80] sm:$0xf]
      %v877 = vld [vmem:[%s1 + $0x84] sm:$0xff]
      %v878 = vld [vmem:[%s1 + $0x8c] sm:$0xf]
      %v879 = vld [vmem:[%s1 + $0x90] sm:$0xff]
      %v880 = vld [vmem:[%s1 + $0x98] sm:$0xf]
      %v881 = vld [vmem:[%s1 + $0x9c] sm:$0xff]
      %v882 = vld [vmem:[%s1 + $0xa4] sm:$0xf]
      %v883 = vld [vmem:[%s1 + $0xa8] sm:$0xff]
      %v884 = vld [vmem:[%s1 + $0xb0] sm:$0xf]
      %v885 = vld [vmem:[%s1 + $0xb4] sm:$0xff]
      %v886 = vld [vmem:[%s1 + $0xbc] sm:$0xf]
      %v887 = vld [vmem:[%s1 + $0xc0] sm:$0xff]
      %v888 = vld [vmem:[%s1 + $0xc8] sm:$0xf]
      %v889 = vld [vmem:[%s1 + $0xcc] sm:$0xff]
      %v890 = vld [vmem:[%s1 + $0xd4] sm:$0xf]
      %v891 = vld [vmem:[%s1 + $0xd8] sm:$0xff]
      %v892 = vld [vmem:[%s1 + $0xe0] sm:$0xf]
      %v893 = vld [vmem:[%s1 + $0xe4] sm:$0xff]
      %v894 = vld [vmem:[%s1 + $0xec] sm:$0xf]
      %v895 = vld [vmem:[%s1 + $0xf0] sm:$0xff]
      %v896 = vld [vmem:[%s1 + $0xf8] sm:$0xf]
      %v897 = vld [vmem:[%s1 + $0xfc] sm:$0xff]
      %v898 = vld [vmem:[%s1 + $0x104] sm:$0xf]
      %v899 = vld [vmem:[%s1 + $0x108] sm:$0xff]
      %v900 = vld [vmem:[%s1 + $0x110] sm:$0xf]
      %v901 = vld [vmem:[%s1 + $0x114] sm:$0xff]
      %v902 = vld [vmem:[%s1 + $0x11c] sm:$0xf]
      %v903 = vld [vmem:[%s1 + $0x120] sm:$0xff]
      %v904 = vld [vmem:[%s1 + $0x128] sm:$0xf]
      %v905 = vld [vmem:[%s1 + $0x12c] sm:$0xff]
      %v906 = vld [vmem:[%s1 + $0x134] sm:$0xf]
      %v907 = vld [vmem:[%s1 + $0x138] sm:$0xff]
      %v908 = vld [vmem:[%s1 + $0x140] sm:$0xf]
      %v909 = vld [vmem:[%s1 + $0x144] sm:$0xff]
      %v910 = vld [vmem:[%s1 + $0x14c] sm:$0xf]
      %v911 = vld [vmem:[%s1 + $0x150] sm:$0xff]
      %v912 = vld [vmem:[%s1 + $0x158] sm:$0xf]
      %v913 = vld [vmem:[%s1 + $0x15c] sm:$0xff]
      %v914 = vld [vmem:[%s1 + $0x164] sm:$0xf]
      %v915 = vld [vmem:[%s1 + $0x168] sm:$0xff]
      %v916 = vld [vmem:[%s1 + $0x170] sm:$0xf]
      %v917 = vld [vmem:[%s1 + $0x174] sm:$0xff]
      %v918 = vld [vmem:[%s1 + $0x17c] sm:$0xf]
      %v983 = vunpack.c.l.b16 %v855
      %v984 = vunpack.c.h.b16 %v855
      %v985 = vunpack.c.l.b16 %v856
      %v986 = vunpack.c.l.b16 %v857
      %v987 = vunpack.c.h.b16 %v857
      %v988 = vunpack.c.l.b16 %v858
      %v989 = vunpack.c.l.b16 %v859
      %v990 = vunpack.c.h.b16 %v859
      %v991 = vunpack.c.l.b16 %v860
      %v992 = vunpack.c.l.b16 %v861
      %v993 = vunpack.c.h.b16 %v861
      %v994 = vunpack.c.l.b16 %v862
      %v995 = vunpack.c.l.b16 %v863
      %v996 = vunpack.c.h.b16 %v863
      %v997 = vunpack.c.l.b16 %v864
      %v998 = vunpack.c.l.b16 %v865
      %v999 = vunpack.c.h.b16 %v865
      %v1000 = vunpack.c.l.b16 %v866
      %v1001 = vunpack.c.l.b16 %v867
      %v1002 = vunpack.c.h.b16 %v867
      %v1003 = vunpack.c.l.b16 %v868
      %v1004 = vunpack.c.l.b16 %v869
      %v1005 = vunpack.c.h.b16 %v869
      %v1006 = vunpack.c.l.b16 %v870
      %v1007 = vunpack.c.l.b16 %v871
      %v1008 = vunpack.c.h.b16 %v871
      %v1009 = vunpack.c.l.b16 %v872
      %v1010 = vunpack.c.l.b16 %v873
      %v1011 = vunpack.c.h.b16 %v873
      %v1012 = vunpack.c.l.b16 %v874
      %v1013 = vunpack.c.l.b16 %v875
      %v1014 = vunpack.c.h.b16 %v875
      %v1015 = vunpack.c.l.b16 %v876
      %v1016 = vunpack.c.l.b16 %v877
      %v1017 = vunpack.c.h.b16 %v877
      %v1018 = vunpack.c.l.b16 %v878
      %v1019 = vunpack.c.l.b16 %v879
      %v1020 = vunpack.c.h.b16 %v879
      %v1021 = vunpack.c.l.b16 %v880
      %v1022 = vunpack.c.l.b16 %v881
      %v1023 = vunpack.c.h.b16 %v881
      %v1024 = vunpack.c.l.b16 %v882
      %v1025 = vunpack.c.l.b16 %v883
      %v1026 = vunpack.c.h.b16 %v883
      %v1027 = vunpack.c.l.b16 %v884
      %v1028 = vunpack.c.l.b16 %v885
      %v1029 = vunpack.c.h.b16 %v885
      %v1030 = vunpack.c.l.b16 %v886
      %v1031 = vunpack.c.l.b16 %v887
      %v1032 = vunpack.c.h.b16 %v887
      %v1033 = vunpack.c.l.b16 %v888
      %v1034 = vunpack.c.l.b16 %v889
      %v1035 = vunpack.c.h.b16 %v889
      %v1036 = vunpack.c.l.b16 %v890
      %v1037 = vunpack.c.l.b16 %v891
      %v1038 = vunpack.c.h.b16 %v891
      %v1039 = vunpack.c.l.b16 %v892
      %v1040 = vunpack.c.l.b16 %v893
      %v1041 = vunpack.c.h.b16 %v893
      %v1042 = vunpack.c.l.b16 %v894
      %v1043 = vunpack.c.l.b16 %v895
      %v1044 = vunpack.c.h.b16 %v895
      %v1045 = vunpack.c.l.b16 %v896
      %v1046 = vunpack.c.l.b16 %v897
      %v1047 = vunpack.c.h.b16 %v897
      %v1048 = vunpack.c.l.b16 %v898
      %v1049 = vunpack.c.l.b16 %v899
      %v1050 = vunpack.c.h.b16 %v899
      %v1051 = vunpack.c.l.b16 %v900
      %v1052 = vunpack.c.l.b16 %v901
      %v1053 = vunpack.c.h.b16 %v901
      %v1054 = vunpack.c.l.b16 %v902
      %v1055 = vunpack.c.l.b16 %v903
      %v1056 = vunpack.c.h.b16 %v903
      %v1057 = vunpack.c.l.b16 %v904
      %v1058 = vunpack.c.l.b16 %v905
      %v1059 = vunpack.c.h.b16 %v905
      %v1060 = vunpack.c.l.b16 %v906
      %v1061 = vunpack.c.l.b16 %v907
      %v1062 = vunpack.c.h.b16 %v907
      %v1063 = vunpack.c.l.b16 %v908
      %v1064 = vunpack.c.l.b16 %v909
      %v1065 = vunpack.c.h.b16 %v909
      %v1066 = vunpack.c.l.b16 %v910
      %v1067 = vunpack.c.l.b16 %v911
      %v1068 = vunpack.c.h.b16 %v911
      %v1069 = vunpack.c.l.b16 %v912
      %v1070 = vunpack.c.l.b16 %v913
      %v1071 = vunpack.c.h.b16 %v913
      %v1072 = vunpack.c.l.b16 %v914
      %v1073 = vunpack.c.l.b16 %v915
      %v1074 = vunpack.c.h.b16 %v915
      %v1075 = vunpack.c.l.b16 %v916
      %v1076 = vunpack.c.l.b16 %v917
      %v1077 = vunpack.c.h.b16 %v917
      %v1078 = vunpack.c.l.b16 %v918
      %v1079 = vpack.c.b16 %v986, %v983
      %v1080 = vpack.c.b16 %v987, %v984
      %v1081 = vpack.c.b16 %v988, %v985
      %v1082 = vpack.c.b16 %v992, %v989
      %v1083 = vpack.c.b16 %v993, %v990
      %v1084 = vpack.c.b16 %v994, %v991
      %v1085 = vpack.c.b16 %v998, %v995
      %v1086 = vpack.c.b16 %v999, %v996
      %v1087 = vpack.c.b16 %v1000, %v997
      %v1088 = vpack.c.b16 %v1004, %v1001
      %v1089 = vpack.c.b16 %v1005, %v1002
      %v1090 = vpack.c.b16 %v1006, %v1003
      %v1091 = vpack.c.b16 %v1010, %v1007
      %v1092 = vpack.c.b16 %v1011, %v1008
      %v1093 = vpack.c.b16 %v1012, %v1009
      %v1094 = vpack.c.b16 %v1016, %v1013
      %v1095 = vpack.c.b16 %v1017, %v1014
      %v1096 = vpack.c.b16 %v1018, %v1015
      %v1097 = vpack.c.b16 %v1022, %v1019
      %v1098 = vpack.c.b16 %v1023, %v1020
      %v1099 = vpack.c.b16 %v1024, %v1021
      %v1100 = vpack.c.b16 %v1028, %v1025
      %v1101 = vpack.c.b16 %v1029, %v1026
      %v1102 = vpack.c.b16 %v1030, %v1027
      %v1103 = vpack.c.b16 %v1034, %v1031
      %v1104 = vpack.c.b16 %v1035, %v1032
      %v1105 = vpack.c.b16 %v1036, %v1033
      %v1106 = vpack.c.b16 %v1040, %v1037
      %v1107 = vpack.c.b16 %v1041, %v1038
      %v1108 = vpack.c.b16 %v1042, %v1039
      %v1109 = vpack.c.b16 %v1046, %v1043
      %v1110 = vpack.c.b16 %v1047, %v1044
      %v1111 = vpack.c.b16 %v1048, %v1045
      %v1112 = vpack.c.b16 %v1052, %v1049
      %v1113 = vpack.c.b16 %v1053, %v1050
      %v1114 = vpack.c.b16 %v1054, %v1051
      %v1115 = vpack.c.b16 %v1058, %v1055
      %v1116 = vpack.c.b16 %v1059, %v1056
      %v1117 = vpack.c.b16 %v1060, %v1057
      %v1118 = vpack.c.b16 %v1064, %v1061
      %v1119 = vpack.c.b16 %v1065, %v1062
      %v1120 = vpack.c.b16 %v1066, %v1063
      %v1121 = vpack.c.b16 %v1070, %v1067
      %v1122 = vpack.c.b16 %v1071, %v1068
      %v1123 = vpack.c.b16 %v1072, %v1069
      %v1124 = vpack.c.b16 %v1076, %v1073
      %v1125 = vpack.c.b16 %v1077, %v1074
      %v1126 = vpack.c.b16 %v1078, %v1075
      %1175 = vmatprep.subr.bf16.mxu0 %v1080
      %1176 = vmatpush1.bf16.msra.mxu0 %v1079
      %1177 = vmatprep.subr.bf16.mxu0 %v1083
      %1178 = vmatpush1.bf16.msra.mxu0 %v1082
      %1179 = vmatprep.subr.bf16.mxu0 %v1086
      %1180 = vmatpush1.bf16.msra.mxu0 %v1085
      %1181 = vmatprep.subr.bf16.mxu0 %v1089
      %1182 = vmatpush1.bf16.msra.mxu0 %v1088
      %1183 = vmatprep.subr.bf16.mxu0 %v1092
      %1184 = vmatpush1.bf16.msra.mxu0 %v1091
      %1185 = vmatprep.subr.bf16.mxu0 %v1095
      %1186 = vmatpush1.bf16.msra.mxu0 %v1094
      %1187 = vmatprep.subr.bf16.mxu0 %v1098
      %1188 = vmatpush1.bf16.msra.mxu0 %v1097
      %1189 = vmatprep.subr.bf16.mxu0 %v1101
      %1190 = vmatpush1.bf16.msra.mxu0 %v1100
      %1191 = vmatprep.subr.bf16.mxu0 %v1104
      %1192 = vmatpush1.bf16.msra.mxu0 %v1103
      %1193 = vmatprep.subr.bf16.mxu0 %v1107
      %1194 = vmatpush1.bf16.msra.mxu0 %v1106
      %1195 = vmatprep.subr.bf16.mxu0 %v1110
      %1196 = vmatpush1.bf16.msra.mxu0 %v1109
      %1197 = vmatprep.subr.bf16.mxu0 %v1113
      %1198 = vmatpush1.bf16.msra.mxu0 %v1112
      %1199 = vmatprep.subr.bf16.mxu0 %v1116
      %1200 = vmatpush1.bf16.msra.mxu0 %v1115
      %1201 = vmatprep.subr.bf16.mxu0 %v1119
      %1202 = vmatpush1.bf16.msra.mxu0 %v1118
      %1203 = vmatprep.subr.bf16.mxu0 %v1122
      %1204 = vmatpush1.bf16.msra.mxu0 %v1121
      %1205 = vmatprep.subr.bf16.mxu0 %v1125
      %1206 = vmatpush1.bf16.msra.mxu0 %v1124
      %1207 = vmatprep.mubr.bf16.mxu0 %v792
      %1208 = vmatmul.mubr.bf16.gmra.mrb[0].mxu0 %v791
      %v1209 = vpop.f32.mrb[0].mxu0
      %v1210 = vadd.f32 0.0, %v1209
      %v1211 = vpop.f32.mrb[0].mxu0
      %v1212 = vadd.f32 0.0, %v1211
      %v1213 = vpop.f32.mrb[0].mxu0
      %v1214 = vadd.f32 0.0, %v1213
      %v1215 = vpop.f32.mrb[0].mxu0
      %v1216 = vadd.f32 0.0, %v1215
      %1217 = vmatprep.mubr.bf16.mxu0 %v794
      %1218 = vmatmul.mubr.bf16.gmra.mrb[0].mxu0 %v793
      %v1219 = vpop.f32.mrb[0].mxu0
      %v1220 = vadd.f32 0.0, %v1219
      %v1221 = vpop.f32.mrb[0].mxu0
      %v1222 = vadd.f32 0.0, %v1221
      %v1223 = vpop.f32.mrb[0].mxu0
      %v1224 = vadd.f32 0.0, %v1223
      %v1225 = vpop.f32.mrb[0].mxu0
      %v1226 = vadd.f32 0.0, %v1225
      %1227 = vmatprep.mubr.bf16.mxu0 %v796
      %1228 = vmatmul.mubr.bf16.gmra.mrb[0].mxu0 %v795
      %v1229 = vpop.f32.mrb[0].mxu0
      %v1230 = vadd.f32 0.0, %v1229
      %v1231 = vpop.f32.mrb[0].mxu0
      %v1232 = vadd.f32 0.0, %v1231
      %v1233 = vpop.f32.mrb[0].mxu0
      %v1234 = vadd.f32 0.0, %v1233
      %v1235 = vpop.f32.mrb[0].mxu0
      %v1236 = vadd.f32 0.0, %v1235
      %1237 = vmatprep.mubr.bf16.mxu0 %v798
      %1238 = vmatmul.mubr.bf16.gmra.mrb[0].mxu0 %v797
      %v1239 = vpop.f32.mrb[0].mxu0
      %v1240 = vadd.f32 0.0, %v1239
      %v1241 = vpop.f32.mrb[0].mxu0
      %v1242 = vadd.f32 0.0, %v1241
      %v1243 = vpop.f32.mrb[0].mxu0
      %v1244 = vadd.f32 0.0, %v1243
      %v1245 = vpop.f32.mrb[0].mxu0
      %v1246 = vadd.f32 0.0, %v1245
      %1247 = vmatprep.mubr.bf16.mxu0 %v800
      %1248 = vmatmul.mubr.bf16.gmra.mrb[0].mxu0 %v799
      %v1249 = vpop.f32.mrb[0].mxu0
      %v1250 = vadd.f32 0.0, %v1249
      %v1251 = vpop.f32.mrb[0].mxu0
      %v1252 = vadd.f32 0.0, %v1251
      %v1253 = vpop.f32.mrb[0].mxu0
      %v1254 = vadd.f32 0.0, %v1253
      %v1255 = vpop.f32.mrb[0].mxu0
      %v1256 = vadd.f32 0.0, %v1255
      %1257 = vmatprep.mubr.bf16.mxu0 %v802
      %1258 = vmatmul.mubr.bf16.gmra.mrb[0].mxu0 %v801
      %v1259 = vpop.f32.mrb[0].mxu0
      %v1260 = vadd.f32 0.0, %v1259
      %v1261 = vpop.f32.mrb[0].mxu0
      %v1262 = vadd.f32 0.0, %v1261
      %v1263 = vpop.f32.mrb[0].mxu0
      %v1264 = vadd.f32 0.0, %v1263
      %v1265 = vpop.f32.mrb[0].mxu0
      %v1266 = vadd.f32 0.0, %v1265
      %1267 = vmatprep.mubr.bf16.mxu0 %v804
      %1268 = vmatmul.mubr.bf16.gmra.mrb[0].mxu0 %v803
      %v1269 = vpop.f32.mrb[0].mxu0
      %v1270 = vadd.f32 0.0, %v1269
      %v1271 = vpop.f32.mrb[0].mxu0
      %v1272 = vadd.f32 0.0, %v1271
      %v1273 = vpop.f32.mrb[0].mxu0
      %v1274 = vadd.f32 0.0, %v1273
      %v1275 = vpop.f32.mrb[0].mxu0
      %v1276 = vadd.f32 0.0, %v1275
      %1277 = vmatprep.mubr.bf16.mxu0 %v806
      %1278 = vmatmul.mubr.bf16.gmra.mrb[0].mxu0 %v805
      %v1279 = vpop.f32.mrb[0].mxu0
      %v1280 = vadd.f32 0.0, %v1279
      %v1281 = vpop.f32.mrb[0].mxu0
      %v1282 = vadd.f32 0.0, %v1281
      %v1283 = vpop.f32.mrb[0].mxu0
      %v1284 = vadd.f32 0.0, %v1283
      %v1285 = vpop.f32.mrb[0].mxu0
      %v1286 = vadd.f32 0.0, %v1285
      %1287 = vmatprep.mubr.bf16.mxu0 %v808
      %1288 = vmatmul.mubr.bf16.gmra.mrb[0].mxu0 %v807
      %v1289 = vpop.f32.mrb[0].mxu0
      %v1290 = vadd.f32 0.0, %v1289
      %v1291 = vpop.f32.mrb[0].mxu0
      %v1292 = vadd.f32 0.0, %v1291
      %v1293 = vpop.f32.mrb[0].mxu0
      %v1294 = vadd.f32 0.0, %v1293
      %v1295 = vpop.f32.mrb[0].mxu0
      %v1296 = vadd.f32 0.0, %v1295
      %1297 = vmatprep.mubr.bf16.mxu0 %v810
      %1298 = vmatmul.mubr.bf16.gmra.mrb[0].mxu0 %v809
      %v1299 = vpop.f32.mrb[0].mxu0
      %v1300 = vadd.f32 0.0, %v1299
      %v1301 = vpop.f32.mrb[0].mxu0
      %v1302 = vadd.f32 0.0, %v1301
      %v1303 = vpop.f32.mrb[0].mxu0
      %v1304 = vadd.f32 0.0, %v1303
      %v1305 = vpop.f32.mrb[0].mxu0
      %v1306 = vadd.f32 0.0, %v1305
      %1307 = vmatprep.mubr.bf16.mxu0 %v812
      %1308 = vmatmul.mubr.bf16.gmra.mrb[0].mxu0 %v811
      %v1309 = vpop.f32.mrb[0].mxu0
      %v1310 = vadd.f32 0.0, %v1309
      %v1311 = vpop.f32.mrb[0].mxu0
      %v1312 = vadd.f32 0.0, %v1311
      %v1313 = vpop.f32.mrb[0].mxu0
      %v1314 = vadd.f32 0.0, %v1313
      %v1315 = vpop.f32.mrb[0].mxu0
      %v1316 = vadd.f32 0.0, %v1315
      %1317 = vmatprep.mubr.bf16.mxu0 %v814
      %1318 = vmatmul.mubr.bf16.gmra.mrb[0].mxu0 %v813
      %v1319 = vpop.f32.mrb[0].mxu0
      %v1320 = vadd.f32 0.0, %v1319
      %v1321 = vpop.f32.mrb[0].mxu0
      %v1322 = vadd.f32 0.0, %v1321
      %v1323 = vpop.f32.mrb[0].mxu0
      %v1324 = vadd.f32 0.0, %v1323
      %v1325 = vpop.f32.mrb[0].mxu0
      %v1326 = vadd.f32 0.0, %v1325
      %1327 = vmatprep.mubr.bf16.mxu0 %v816
      %1328 = vmatmul.mubr.bf16.gmra.mrb[0].mxu0 %v815
      %v1329 = vpop.f32.mrb[0].mxu0
      %v1330 = vadd.f32 0.0, %v1329
      %v1331 = vpop.f32.mrb[0].mxu0
      %v1332 = vadd.f32 0.0, %v1331
      %v1333 = vpop.f32.mrb[0].mxu0
      %v1334 = vadd.f32 0.0, %v1333
      %v1335 = vpop.f32.mrb[0].mxu0
      %v1336 = vadd.f32 0.0, %v1335
      %1337 = vmatprep.mubr.bf16.mxu0 %v818
      %1338 = vmatmul.mubr.bf16.gmra.mrb[0].mxu0 %v817
      %v1339 = vpop.f32.mrb[0].mxu0
      %v1340 = vadd.f32 0.0, %v1339
      %v1341 = vpop.f32.mrb[0].mxu0
      %v1342 = vadd.f32 0.0, %v1341
      %v1343 = vpop.f32.mrb[0].mxu0
      %v1344 = vadd.f32 0.0, %v1343
      %v1345 = vpop.f32.mrb[0].mxu0
      %v1346 = vadd.f32 0.0, %v1345
      %1347 = vmatprep.mubr.bf16.mxu0 %v820
      %1348 = vmatmul.mubr.bf16.gmra.mrb[0].mxu0 %v819
      %v1349 = vpop.f32.mrb[0].mxu0
      %v1350 = vadd.f32 0.0, %v1349
      %v1351 = vpop.f32.mrb[0].mxu0
      %v1352 = vadd.f32 0.0, %v1351
      %v1353 = vpop.f32.mrb[0].mxu0
      %v1354 = vadd.f32 0.0, %v1353
      %v1355 = vpop.f32.mrb[0].mxu0
      %v1356 = vadd.f32 0.0, %v1355
      %1357 = vmatprep.mubr.bf16.mxu0 %v822
      %1358 = vmatmul.mubr.bf16.gmra.mrb[0].mxu0 %v821
      %v1359 = vpop.f32.mrb[0].mxu0
      %v1360 = vadd.f32 0.0, %v1359
      %v1361 = vpop.f32.mrb[0].mxu0
      %v1362 = vadd.f32 0.0, %v1361
      %v1363 = vpop.f32.mrb[0].mxu0
      %v1364 = vadd.f32 0.0, %v1363
      %v1365 = vpop.f32.mrb[0].mxu0
      %v1366 = vadd.f32 0.0, %v1365
      %1367 = vmatprep.mubr.bf16.mxu0 %v824
      %1368 = vmatmul.mubr.bf16.gmra.mrb[0].mxu0 %v823
      %v1369 = vpop.f32.mrb[0].mxu0
      %v1370 = vadd.f32 0.0, %v1369
      %v1371 = vpop.f32.mrb[0].mxu0
      %v1372 = vadd.f32 0.0, %v1371
      %v1373 = vpop.f32.mrb[0].mxu0
      %v1374 = vadd.f32 0.0, %v1373
      %v1375 = vpop.f32.mrb[0].mxu0
      %v1376 = vadd.f32 0.0, %v1375
      %1377 = vmatprep.mubr.bf16.mxu0 %v826
      %1378 = vmatmul.mubr.bf16.gmra.mrb[0].mxu0 %v825
      %v1379 = vpop.f32.mrb[0].mxu0
      %v1380 = vadd.f32 0.0, %v1379
      %v1381 = vpop.f32.mrb[0].mxu0
      %v1382 = vadd.f32 0.0, %v1381
      %v1383 = vpop.f32.mrb[0].mxu0
      %v1384 = vadd.f32 0.0, %v1383
      %v1385 = vpop.f32.mrb[0].mxu0
      %v1386 = vadd.f32 0.0, %v1385
      %1387 = vmatprep.mubr.bf16.mxu0 %v828
      %1388 = vmatmul.mubr.bf16.gmra.mrb[0].mxu0 %v827
      %v1389 = vpop.f32.mrb[0].mxu0
      %v1390 = vadd.f32 0.0, %v1389
      %v1391 = vpop.f32.mrb[0].mxu0
      %v1392 = vadd.f32 0.0, %v1391
      %v1393 = vpop.f32.mrb[0].mxu0
      %v1394 = vadd.f32 0.0, %v1393
      %v1395 = vpop.f32.mrb[0].mxu0
      %v1396 = vadd.f32 0.0, %v1395
      %1397 = vmatprep.mubr.bf16.mxu0 %v830
      %1398 = vmatmul.mubr.bf16.gmra.mrb[0].mxu0 %v829
      %v1399 = vpop.f32.mrb[0].mxu0
      %v1400 = vadd.f32 0.0, %v1399
      %v1401 = vpop.f32.mrb[0].mxu0
      %v1402 = vadd.f32 0.0, %v1401
      %v1403 = vpop.f32.mrb[0].mxu0
      %v1404 = vadd.f32 0.0, %v1403
      %v1405 = vpop.f32.mrb[0].mxu0
      %v1406 = vadd.f32 0.0, %v1405
      %1407 = vmatprep.mubr.bf16.mxu0 %v832
      %1408 = vmatmul.mubr.bf16.gmra.mrb[0].mxu0 %v831
      %v1409 = vpop.f32.mrb[0].mxu0
      %v1410 = vadd.f32 0.0, %v1409
      %v1411 = vpop.f32.mrb[0].mxu0
      %v1412 = vadd.f32 0.0, %v1411
      %v1413 = vpop.f32.mrb[0].mxu0
      %v1414 = vadd.f32 0.0, %v1413
      %v1415 = vpop.f32.mrb[0].mxu0
      %v1416 = vadd.f32 0.0, %v1415
      %1417 = vmatprep.mubr.bf16.mxu0 %v834
      %1418 = vmatmul.mubr.bf16.gmra.mrb[0].mxu0 %v833
      %v1419 = vpop.f32.mrb[0].mxu0
      %v1420 = vadd.f32 0.0, %v1419
      %v1421 = vpop.f32.mrb[0].mxu0
      %v1422 = vadd.f32 0.0, %v1421
      %v1423 = vpop.f32.mrb[0].mxu0
      %v1424 = vadd.f32 0.0, %v1423
      %v1425 = vpop.f32.mrb[0].mxu0
      %v1426 = vadd.f32 0.0, %v1425
      %1427 = vmatprep.mubr.bf16.mxu0 %v836
      %1428 = vmatmul.mubr.bf16.gmra.mrb[0].mxu0 %v835
      %v1429 = vpop.f32.mrb[0].mxu0
      %v1430 = vadd.f32 0.0, %v1429
      %v1431 = vpop.f32.mrb[0].mxu0
      %v1432 = vadd.f32 0.0, %v1431
      %v1433 = vpop.f32.mrb[0].mxu0
      %v1434 = vadd.f32 0.0, %v1433
      %v1435 = vpop.f32.mrb[0].mxu0
      %v1436 = vadd.f32 0.0, %v1435
      %1437 = vmatprep.mubr.bf16.mxu0 %v838
      %1438 = vmatmul.mubr.bf16.gmra.mrb[0].mxu0 %v837
      %v1439 = vpop.f32.mrb[0].mxu0
      %v1440 = vadd.f32 0.0, %v1439
      %v1441 = vpop.f32.mrb[0].mxu0
      %v1442 = vadd.f32 0.0, %v1441
      %v1443 = vpop.f32.mrb[0].mxu0
      %v1444 = vadd.f32 0.0, %v1443
      %v1445 = vpop.f32.mrb[0].mxu0
      %v1446 = vadd.f32 0.0, %v1445
      %1447 = vmatprep.mubr.bf16.mxu0 %v840
      %1448 = vmatmul.mubr.bf16.gmra.mrb[0].mxu0 %v839
      %v1449 = vpop.f32.mrb[0].mxu0
      %v1450 = vadd.f32 0.0, %v1449
      %v1451 = vpop.f32.mrb[0].mxu0
      %v1452 = vadd.f32 0.0, %v1451
      %v1453 = vpop.f32.mrb[0].mxu0
      %v1454 = vadd.f32 0.0, %v1453
      %v1455 = vpop.f32.mrb[0].mxu0
      %v1456 = vadd.f32 0.0, %v1455
      %1457 = vmatprep.mubr.bf16.mxu0 %v842
      %1458 = vmatmul.mubr.bf16.gmra.mrb[0].mxu0 %v841
      %v1459 = vpop.f32.mrb[0].mxu0
      %v1460 = vadd.f32 0.0, %v1459
      %v1461 = vpop.f32.mrb[0].mxu0
      %v1462 = vadd.f32 0.0, %v1461
      %v1463 = vpop.f32.mrb[0].mxu0
      %v1464 = vadd.f32 0.0, %v1463
      %v1465 = vpop.f32.mrb[0].mxu0
      %v1466 = vadd.f32 0.0, %v1465
      %1467 = vmatprep.mubr.bf16.mxu0 %v844
      %1468 = vmatmul.mubr.bf16.gmra.mrb[0].mxu0 %v843
      %v1469 = vpop.f32.mrb[0].mxu0
      %v1470 = vadd.f32 0.0, %v1469
      %v1471 = vpop.f32.mrb[0].mxu0
      %v1472 = vadd.f32 0.0, %v1471
      %v1473 = vpop.f32.mrb[0].mxu0
      %v1474 = vadd.f32 0.0, %v1473
      %v1475 = vpop.f32.mrb[0].mxu0
      %v1476 = vadd.f32 0.0, %v1475
      %1477 = vmatprep.mubr.bf16.mxu0 %v846
      %1478 = vmatmul.mubr.bf16.gmra.mrb[0].mxu0 %v845
      %v1479 = vpop.f32.mrb[0].mxu0
      %v1480 = vadd.f32 0.0, %v1479
      %v1481 = vpop.f32.mrb[0].mxu0
      %v1482 = vadd.f32 0.0, %v1481
      %v1483 = vpop.f32.mrb[0].mxu0
      %v1484 = vadd.f32 0.0, %v1483
      %v1485 = vpop.f32.mrb[0].mxu0
      %v1486 = vadd.f32 0.0, %v1485
      %1487 = vmatprep.mubr.bf16.mxu0 %v848
      %1488 = vmatmul.mubr.bf16.gmra.mrb[0].mxu0 %v847
      %v1489 = vpop.f32.mrb[0].mxu0
      %v1490 = vadd.f32 0.0, %v1489
      %v1491 = vpop.f32.mrb[0].mxu0
      %v1492 = vadd.f32 0.0, %v1491
      %v1493 = vpop.f32.mrb[0].mxu0
      %v1494 = vadd.f32 0.0, %v1493
      %v1495 = vpop.f32.mrb[0].mxu0
      %v1496 = vadd.f32 0.0, %v1495
      %1497 = vmatprep.mubr.bf16.mxu0 %v850
      %1498 = vmatmul.mubr.bf16.gmra.mrb[0].mxu0 %v849
      %v1499 = vpop.f32.mrb[0].mxu0
      %v1500 = vadd.f32 0.0, %v1499
      %v1501 = vpop.f32.mrb[0].mxu0
      %v1502 = vadd.f32 0.0, %v1501
      %v1503 = vpop.f32.mrb[0].mxu0
      %v1504 = vadd.f32 0.0, %v1503
      %v1505 = vpop.f32.mrb[0].mxu0
      %v1506 = vadd.f32 0.0, %v1505
      %1507 = vmatprep.mubr.bf16.mxu0 %v852
      %1508 = vmatmul.mubr.bf16.gmra.mrb[0].mxu0 %v851
      %v1509 = vpop.f32.mrb[0].mxu0
      %v1510 = vadd.f32 0.0, %v1509
      %v1511 = vpop.f32.mrb[0].mxu0
      %v1512 = vadd.f32 0.0, %v1511
      %v1513 = vpop.f32.mrb[0].mxu0
      %v1514 = vadd.f32 0.0, %v1513
      %v1515 = vpop.f32.mrb[0].mxu0
      %v1516 = vadd.f32 0.0, %v1515
      %1517 = vmatprep.mubr.bf16.mxu0 %v854
      %1518 = vmatmul.mubr.bf16.gmra.mrb[0].mxu0 %v853
      %v1519 = vpop.f32.mrb[0].mxu0
      %v1520 = vadd.f32 0.0, %v1519
      %v1521 = vpop.f32.mrb[0].mxu0
      %v1522 = vadd.f32 0.0, %v1521
      %v1523 = vpop.f32.mrb[0].mxu0
      %v1524 = vadd.f32 0.0, %v1523
      %v1525 = vpop.f32.mrb[0].mxu0
      %v1526 = vadd.f32 0.0, %v1525
      %1527 = vdwg.mxu0
      %1528 = vmatprep.subr.bf16.mxu0 0
      %1529 = vmatpush1.bf16.msra.mxu0 %v1081
      %1530 = vmatprep.subr.bf16.mxu0 0
      %1531 = vmatpush1.bf16.msra.mxu0 %v1084
      %1532 = vmatprep.subr.bf16.mxu0 0
      %1533 = vmatpush1.bf16.msra.mxu0 %v1087
      %1534 = vmatprep.subr.bf16.mxu0 0
      %1535 = vmatpush1.bf16.msra.mxu0 %v1090
      %1536 = vmatprep.subr.bf16.mxu0 0
      %1537 = vmatpush1.bf16.msra.mxu0 %v1093
      %1538 = vmatprep.subr.bf16.mxu0 0
      %1539 = vmatpush1.bf16.msra.mxu0 %v1096
      %1540 = vmatprep.subr.bf16.mxu0 0
      %1541 = vmatpush1.bf16.msra.mxu0 %v1099
      %1542 = vmatprep.subr.bf16.mxu0 0
      %1543 = vmatpush1.bf16.msra.mxu0 %v1102
      %1544 = vmatprep.subr.bf16.mxu0 0
      %1545 = vmatpush1.bf16.msra.mxu0 %v1105
      %1546 = vmatprep.subr.bf16.mxu0 0
      %1547 = vmatpush1.bf16.msra.mxu0 %v1108
      %1548 = vmatprep.subr.bf16.mxu0 0
      %1549 = vmatpush1.bf16.msra.mxu0 %v1111
      %1550 = vmatprep.subr.bf16.mxu0 0
      %1551 = vmatpush1.bf16.msra.mxu0 %v1114
      %1552 = vmatprep.subr.bf16.mxu0 0
      %1553 = vmatpush1.bf16.msra.mxu0 %v1117
      %1554 = vmatprep.subr.bf16.mxu0 0
      %1555 = vmatpush1.bf16.msra.mxu0 %v1120
      %1556 = vmatprep.subr.bf16.mxu0 0
      %1557 = vmatpush1.bf16.msra.mxu0 %v1123
      %1558 = vmatprep.subr.bf16.mxu0 0
      %1559 = vmatpush1.bf16.msra.mxu0 %v1126
      %1560 = vmatprep.mubr.bf16.mxu0 %v792
      %1561 = vmatmul.mubr.bf16.gmra.mrb[0].mxu0 %v791
      %v1562 = vpop.f32.mrb[0].mxu0
      %v1563 = vadd.f32 0.0, %v1562
      %v1564 = vpop.f32.mrb[0].mxu0
      %v1565 = vpop.f32.mrb[0].mxu0
      %v1566 = vadd.f32 0.0, %v1565
      %v1567 = vpop.f32.mrb[0].mxu0
      %1568 = vmatprep.mubr.bf16.mxu0 %v794
      %1569 = vmatmul.mubr.bf16.gmra.mrb[0].mxu0 %v793
      %v1570 = vpop.f32.mrb[0].mxu0
      %v1571 = vadd.f32 0.0, %v1570
      %v1572 = vpop.f32.mrb[0].mxu0
      %v1573 = vpop.f32.mrb[0].mxu0
      %v1574 = vadd.f32 0.0, %v1573
      %v1575 = vpop.f32.mrb[0].mxu0
      %1576 = vmatprep.mubr.bf16.mxu0 %v796
      %1577 = vmatmul.mubr.bf16.gmra.mrb[0].mxu0 %v795
      %v1578 = vpop.f32.mrb[0].mxu0
      %v1579 = vadd.f32 0.0, %v1578
      %v1580 = vpop.f32.mrb[0].mxu0
      %v1581 = vpop.f32.mrb[0].mxu0
      %v1582 = vadd.f32 0.0, %v1581
      %v1583 = vpop.f32.mrb[0].mxu0
      %1584 = vmatprep.mubr.bf16.mxu0 %v798
      %1585 = vmatmul.mubr.bf16.gmra.mrb[0].mxu0 %v797
      %v1586 = vpop.f32.mrb[0].mxu0
      %v1587 = vadd.f32 0.0, %v1586
      %v1588 = vpop.f32.mrb[0].mxu0
      %v1589 = vpop.f32.mrb[0].mxu0
      %v1590 = vadd.f32 0.0, %v1589
      %v1591 = vpop.f32.mrb[0].mxu0
      %1592 = vmatprep.mubr.bf16.mxu0 %v800
      %1593 = vmatmul.mubr.bf16.gmra.mrb[0].mxu0 %v799
      %v1594 = vpop.f32.mrb[0].mxu0
      %v1595 = vadd.f32 0.0, %v1594
      %v1596 = vpop.f32.mrb[0].mxu0
      %v1597 = vpop.f32.mrb[0].mxu0
      %v1598 = vadd.f32 0.0, %v1597
      %v1599 = vpop.f32.mrb[0].mxu0
      %1600 = vmatprep.mubr.bf16.mxu0 %v802
      %1601 = vmatmul.mubr.bf16.gmra.mrb[0].mxu0 %v801
      %v1602 = vpop.f32.mrb[0].mxu0
      %v1603 = vadd.f32 0.0, %v1602
      %v1604 = vpop.f32.mrb[0].mxu0
      %v1605 = vpop.f32.mrb[0].mxu0
      %v1606 = vadd.f32 0.0, %v1605
      %v1607 = vpop.f32.mrb[0].mxu0
      %1608 = vmatprep.mubr.bf16.mxu0 %v804
      %1609 = vmatmul.mubr.bf16.gmra.mrb[0].mxu0 %v803
      %v1610 = vpop.f32.mrb[0].mxu0
      %v1611 = vadd.f32 0.0, %v1610
      %v1612 = vpop.f32.mrb[0].mxu0
      %v1613 = vpop.f32.mrb[0].mxu0
      %v1614 = vadd.f32 0.0, %v1613
      %v1615 = vpop.f32.mrb[0].mxu0
      %1616 = vmatprep.mubr.bf16.mxu0 %v806
      %1617 = vmatmul.mubr.bf16.gmra.mrb[0].mxu0 %v805
      %v1618 = vpop.f32.mrb[0].mxu0
      %v1619 = vadd.f32 0.0, %v1618
      %v1620 = vpop.f32.mrb[0].mxu0
      %v1621 = vpop.f32.mrb[0].mxu0
      %v1622 = vadd.f32 0.0, %v1621
      %v1623 = vpop.f32.mrb[0].mxu0
      %1624 = vmatprep.mubr.bf16.mxu0 %v808
      %1625 = vmatmul.mubr.bf16.gmra.mrb[0].mxu0 %v807
      %v1626 = vpop.f32.mrb[0].mxu0
      %v1627 = vadd.f32 0.0, %v1626
      %v1628 = vpop.f32.mrb[0].mxu0
      %v1629 = vpop.f32.mrb[0].mxu0
      %v1630 = vadd.f32 0.0, %v1629
      %v1631 = vpop.f32.mrb[0].mxu0
      %1632 = vmatprep.mubr.bf16.mxu0 %v810
      %1633 = vmatmul.mubr.bf16.gmra.mrb[0].mxu0 %v809
      %v1634 = vpop.f32.mrb[0].mxu0
      %v1635 = vadd.f32 0.0, %v1634
      %v1636 = vpop.f32.mrb[0].mxu0
      %v1637 = vpop.f32.mrb[0].mxu0
      %v1638 = vadd.f32 0.0, %v1637
      %v1639 = vpop.f32.mrb[0].mxu0
      %1640 = vmatprep.mubr.bf16.mxu0 %v812
      %1641 = vmatmul.mubr.bf16.gmra.mrb[0].mxu0 %v811
      %v1642 = vpop.f32.mrb[0].mxu0
      %v1643 = vadd.f32 0.0, %v1642
      %v1644 = vpop.f32.mrb[0].mxu0
      %v1645 = vpop.f32.mrb[0].mxu0
      %v1646 = vadd.f32 0.0, %v1645
      %v1647 = vpop.f32.mrb[0].mxu0
      %1648 = vmatprep.mubr.bf16.mxu0 %v814
      %1649 = vmatmul.mubr.bf16.gmra.mrb[0].mxu0 %v813
      %v1650 = vpop.f32.mrb[0].mxu0
      %v1651 = vadd.f32 0.0, %v1650
      %v1652 = vpop.f32.mrb[0].mxu0
      %v1653 = vpop.f32.mrb[0].mxu0
      %v1654 = vadd.f32 0.0, %v1653
      %v1655 = vpop.f32.mrb[0].mxu0
      %1656 = vmatprep.mubr.bf16.mxu0 %v816
      %1657 = vmatmul.mubr.bf16.gmra.mrb[0].mxu0 %v815
      %v1658 = vpop.f32.mrb[0].mxu0
      %v1659 = vadd.f32 0.0, %v1658
      %v1660 = vpop.f32.mrb[0].mxu0
      %v1661 = vpop.f32.mrb[0].mxu0
      %v1662 = vadd.f32 0.0, %v1661
      %v1663 = vpop.f32.mrb[0].mxu0
      %1664 = vmatprep.mubr.bf16.mxu0 %v818
      %1665 = vmatmul.mubr.bf16.gmra.mrb[0].mxu0 %v817
      %v1666 = vpop.f32.mrb[0].mxu0
      %v1667 = vadd.f32 0.0, %v1666
      %v1668 = vpop.f32.mrb[0].mxu0
      %v1669 = vpop.f32.mrb[0].mxu0
      %v1670 = vadd.f32 0.0, %v1669
      %v1671 = vpop.f32.mrb[0].mxu0
      %1672 = vmatprep.mubr.bf16.mxu0 %v820
      %1673 = vmatmul.mubr.bf16.gmra.mrb[0].mxu0 %v819
      %v1674 = vpop.f32.mrb[0].mxu0
      %v1675 = vadd.f32 0.0, %v1674
      %v1676 = vpop.f32.mrb[0].mxu0
      %v1677 = vpop.f32.mrb[0].mxu0
      %v1678 = vadd.f32 0.0, %v1677
      %v1679 = vpop.f32.mrb[0].mxu0
      %1680 = vmatprep.mubr.bf16.mxu0 %v822
      %1681 = vmatmul.mubr.bf16.gmra.mrb[0].mxu0 %v821
      %v1682 = vpop.f32.mrb[0].mxu0
      %v1683 = vadd.f32 0.0, %v1682
      %v1684 = vpop.f32.mrb[0].mxu0
      %v1685 = vpop.f32.mrb[0].mxu0
      %v1686 = vadd.f32 0.0, %v1685
      %v1687 = vpop.f32.mrb[0].mxu0
      %1688 = vmatprep.mubr.bf16.mxu0 %v824
      %1689 = vmatmul.mubr.bf16.gmra.mrb[0].mxu0 %v823
      %v1690 = vpop.f32.mrb[0].mxu0
      %v1691 = vadd.f32 0.0, %v1690
      %v1692 = vpop.f32.mrb[0].mxu0
      %v1693 = vpop.f32.mrb[0].mxu0
      %v1694 = vadd.f32 0.0, %v1693
      %v1695 = vpop.f32.mrb[0].mxu0
      %1696 = vmatprep.mubr.bf16.mxu0 %v826
      %1697 = vmatmul.mubr.bf16.gmra.mrb[0].mxu0 %v825
      %v1698 = vpop.f32.mrb[0].mxu0
      %v1699 = vadd.f32 0.0, %v1698
      %v1700 = vpop.f32.mrb[0].mxu0
      %v1701 = vpop.f32.mrb[0].mxu0
      %v1702 = vadd.f32 0.0, %v1701
      %v1703 = vpop.f32.mrb[0].mxu0
      %1704 = vmatprep.mubr.bf16.mxu0 %v828
      %1705 = vmatmul.mubr.bf16.gmra.mrb[0].mxu0 %v827
      %v1706 = vpop.f32.mrb[0].mxu0
      %v1707 = vadd.f32 0.0, %v1706
      %v1708 = vpop.f32.mrb[0].mxu0
      %v1709 = vpop.f32.mrb[0].mxu0
      %v1710 = vadd.f32 0.0, %v1709
      %v1711 = vpop.f32.mrb[0].mxu0
      %1712 = vmatprep.mubr.bf16.mxu0 %v830
      %1713 = vmatmul.mubr.bf16.gmra.mrb[0].mxu0 %v829
      %v1714 = vpop.f32.mrb[0].mxu0
      %v1715 = vadd.f32 0.0, %v1714
      %v1716 = vpop.f32.mrb[0].mxu0
      %v1717 = vpop.f32.mrb[0].mxu0
      %v1718 = vadd.f32 0.0, %v1717
      %v1719 = vpop.f32.mrb[0].mxu0
      %1720 = vmatprep.mubr.bf16.mxu0 %v832
      %1721 = vmatmul.mubr.bf16.gmra.mrb[0].mxu0 %v831
      %v1722 = vpop.f32.mrb[0].mxu0
      %v1723 = vadd.f32 0.0, %v1722
      %v1724 = vpop.f32.mrb[0].mxu0
      %v1725 = vpop.f32.mrb[0].mxu0
      %v1726 = vadd.f32 0.0, %v1725
      %v1727 = vpop.f32.mrb[0].mxu0
      %1728 = vmatprep.mubr.bf16.mxu0 %v834
      %1729 = vmatmul.mubr.bf16.gmra.mrb[0].mxu0 %v833
      %v1730 = vpop.f32.mrb[0].mxu0
      %v1731 = vadd.f32 0.0, %v1730
      %v1732 = vpop.f32.mrb[0].mxu0
      %v1733 = vpop.f32.mrb[0].mxu0
      %v1734 = vadd.f32 0.0, %v1733
      %v1735 = vpop.f32.mrb[0].mxu0
      %1736 = vmatprep.mubr.bf16.mxu0 %v836
      %1737 = vmatmul.mubr.bf16.gmra.mrb[0].mxu0 %v835
      %v1738 = vpop.f32.mrb[0].mxu0
      %v1739 = vadd.f32 0.0, %v1738
      %v1740 = vpop.f32.mrb[0].mxu0
      %v1741 = vpop.f32.mrb[0].mxu0
      %v1742 = vadd.f32 0.0, %v1741
      %v1743 = vpop.f32.mrb[0].mxu0
      %1744 = vmatprep.mubr.bf16.mxu0 %v838
      %1745 = vmatmul.mubr.bf16.gmra.mrb[0].mxu0 %v837
      %v1746 = vpop.f32.mrb[0].mxu0
      %v1747 = vadd.f32 0.0, %v1746
      %v1748 = vpop.f32.mrb[0].mxu0
      %v1749 = vpop.f32.mrb[0].mxu0
      %v1750 = vadd.f32 0.0, %v1749
      %v1751 = vpop.f32.mrb[0].mxu0
      %1752 = vmatprep.mubr.bf16.mxu0 %v840
      %1753 = vmatmul.mubr.bf16.gmra.mrb[0].mxu0 %v839
      %v1754 = vpop.f32.mrb[0].mxu0
      %v1755 = vadd.f32 0.0, %v1754
      %v1756 = vpop.f32.mrb[0].mxu0
      %v1757 = vpop.f32.mrb[0].mxu0
      %v1758 = vadd.f32 0.0, %v1757
      %v1759 = vpop.f32.mrb[0].mxu0
      %1760 = vmatprep.mubr.bf16.mxu0 %v842
      %1761 = vmatmul.mubr.bf16.gmra.mrb[0].mxu0 %v841
      %v1762 = vpop.f32.mrb[0].mxu0
      %v1763 = vadd.f32 0.0, %v1762
      %v1764 = vpop.f32.mrb[0].mxu0
      %v1765 = vpop.f32.mrb[0].mxu0
      %v1766 = vadd.f32 0.0, %v1765
      %v1767 = vpop.f32.mrb[0].mxu0
      %1768 = vmatprep.mubr.bf16.mxu0 %v844
      %1769 = vmatmul.mubr.bf16.gmra.mrb[0].mxu0 %v843
      %v1770 = vpop.f32.mrb[0].mxu0
      %v1771 = vadd.f32 0.0, %v1770
      %v1772 = vpop.f32.mrb[0].mxu0
      %v1773 = vpop.f32.mrb[0].mxu0
      %v1774 = vadd.f32 0.0, %v1773
      %v1775 = vpop.f32.mrb[0].mxu0
      %1776 = vmatprep.mubr.bf16.mxu0 %v846
      %1777 = vmatmul.mubr.bf16.gmra.mrb[0].mxu0 %v845
      %v1778 = vpop.f32.mrb[0].mxu0
      %v1779 = vadd.f32 0.0, %v1778
      %v1780 = vpop.f32.mrb[0].mxu0
      %v1781 = vpop.f32.mrb[0].mxu0
      %v1782 = vadd.f32 0.0, %v1781
      %v1783 = vpop.f32.mrb[0].mxu0
      %1784 = vmatprep.mubr.bf16.mxu0 %v848
      %1785 = vmatmul.mubr.bf16.gmra.mrb[0].mxu0 %v847
      %v1786 = vpop.f32.mrb[0].mxu0
      %v1787 = vadd.f32 0.0, %v1786
      %v1788 = vpop.f32.mrb[0].mxu0
      %v1789 = vpop.f32.mrb[0].mxu0
      %v1790 = vadd.f32 0.0, %v1789
      %v1791 = vpop.f32.mrb[0].mxu0
      %1792 = vmatprep.mubr.bf16.mxu0 %v850
      %1793 = vmatmul.mubr.bf16.gmra.mrb[0].mxu0 %v849
      %v1794 = vpop.f32.mrb[0].mxu0
      %v1795 = vadd.f32 0.0, %v1794
      %v1796 = vpop.f32.mrb[0].mxu0
      %v1797 = vpop.f32.mrb[0].mxu0
      %v1798 = vadd.f32 0.0, %v1797
      %v1799 = vpop.f32.mrb[0].mxu0
      %1800 = vmatprep.mubr.bf16.mxu0 %v852
      %1801 = vmatmul.mubr.bf16.gmra.mrb[0].mxu0 %v851
      %v1802 = vpop.f32.mrb[0].mxu0
      %v1803 = vadd.f32 0.0, %v1802
      %v1804 = vpop.f32.mrb[0].mxu0
      %v1805 = vpop.f32.mrb[0].mxu0
      %v1806 = vadd.f32 0.0, %v1805
      %v1807 = vpop.f32.mrb[0].mxu0
      %1808 = vmatprep.mubr.bf16.mxu0 %v854
      %1809 = vmatmul.mubr.bf16.gmra.mrb[0].mxu0 %v853
      %v1810 = vpop.f32.mrb[0].mxu0
      %v1811 = vadd.f32 0.0, %v1810
      %v1812 = vpop.f32.mrb[0].mxu0
      %v1813 = vpop.f32.mrb[0].mxu0
      %v1814 = vadd.f32 0.0, %v1813
      %v1815 = vpop.f32.mrb[0].mxu0
      %1816 = vdwg.mxu0
      %v1817 = vadd.f32 %v1210, %v1212
      %v1818 = vadd.f32 %v1214, %v1216
      %v1819 = vadd.f32 %v1220, %v1222
      %v1820 = vadd.f32 %v1224, %v1226
      %v1821 = vadd.f32 %v1230, %v1232
      %v1822 = vadd.f32 %v1234, %v1236
      %v1823 = vadd.f32 %v1240, %v1242
      %v1824 = vadd.f32 %v1244, %v1246
      %v1825 = vadd.f32 %v1250, %v1252
      %v1826 = vadd.f32 %v1254, %v1256
      %v1827 = vadd.f32 %v1260, %v1262
      %v1828 = vadd.f32 %v1264, %v1266
      %v1829 = vadd.f32 %v1270, %v1272
      %v1830 = vadd.f32 %v1274, %v1276
      %v1831 = vadd.f32 %v1280, %v1282
      %v1832 = vadd.f32 %v1284, %v1286
      %v1833 = vadd.f32 %v1290, %v1292
      %v1834 = vadd.f32 %v1294, %v1296
      %v1835 = vadd.f32 %v1300, %v1302
      %v1836 = vadd.f32 %v1304, %v1306
      %v1837 = vadd.f32 %v1310, %v1312
      %v1838 = vadd.f32 %v1314, %v1316
      %v1839 = vadd.f32 %v1320, %v1322
      %v1840 = vadd.f32 %v1324, %v1326
      %v1841 = vadd.f32 %v1330, %v1332
      %v1842 = vadd.f32 %v1334, %v1336
      %v1843 = vadd.f32 %v1340, %v1342
      %v1844 = vadd.f32 %v1344, %v1346
      %v1845 = vadd.f32 %v1350, %v1352
      %v1846 = vadd.f32 %v1354, %v1356
      %v1847 = vadd.f32 %v1360, %v1362
      %v1848 = vadd.f32 %v1364, %v1366
      %v1849 = vadd.f32 %v1370, %v1372
      %v1850 = vadd.f32 %v1374, %v1376
      %v1851 = vadd.f32 %v1380, %v1382
      %v1852 = vadd.f32 %v1384, %v1386
      %v1853 = vadd.f32 %v1390, %v1392
      %v1854 = vadd.f32 %v1394, %v1396
      %v1855 = vadd.f32 %v1400, %v1402
      %v1856 = vadd.f32 %v1404, %v1406
      %v1857 = vadd.f32 %v1410, %v1412
      %v1858 = vadd.f32 %v1414, %v1416
      %v1859 = vadd.f32 %v1420, %v1422
      %v1860 = vadd.f32 %v1424, %v1426
      %v1861 = vadd.f32 %v1430, %v1432
      %v1862 = vadd.f32 %v1434, %v1436
      %v1863 = vadd.f32 %v1440, %v1442
      %v1864 = vadd.f32 %v1444, %v1446
      %v1865 = vadd.f32 %v1450, %v1452
      %v1866 = vadd.f32 %v1454, %v1456
      %v1867 = vadd.f32 %v1460, %v1462
      %v1868 = vadd.f32 %v1464, %v1466
      %v1869 = vadd.f32 %v1470, %v1472
      %v1870 = vadd.f32 %v1474, %v1476
      %v1871 = vadd.f32 %v1480, %v1482
      %v1872 = vadd.f32 %v1484, %v1486
      %v1873 = vadd.f32 %v1490, %v1492
      %v1874 = vadd.f32 %v1494, %v1496
      %v1875 = vadd.f32 %v1500, %v1502
      %v1876 = vadd.f32 %v1504, %v1506
      %v1877 = vadd.f32 %v1510, %v1512
      %v1878 = vadd.f32 %v1514, %v1516
      %v1879 = vadd.f32 %v1520, %v1522
      %v1880 = vadd.f32 %v1524, %v1526
      %v1881 = vadd.f32 %v1817, %v1563
      %v1882 = vadd.f32 %v1818, %v1566
      %v1883 = vadd.f32 %v1819, %v1571
      %v1884 = vadd.f32 %v1820, %v1574
      %v1885 = vadd.f32 %v1821, %v1579
      %v1886 = vadd.f32 %v1822, %v1582
      %v1887 = vadd.f32 %v1823, %v1587
      %v1888 = vadd.f32 %v1824, %v1590
      %v1889 = vadd.f32 %v1825, %v1595
      %v1890 = vadd.f32 %v1826, %v1598
      %v1891 = vadd.f32 %v1827, %v1603
      %v1892 = vadd.f32 %v1828, %v1606
      %v1893 = vadd.f32 %v1829, %v1611
      %v1894 = vadd.f32 %v1830, %v1614
      %v1895 = vadd.f32 %v1831, %v1619
      %v1896 = vadd.f32 %v1832, %v1622
      %v1897 = vadd.f32 %v1833, %v1627
      %v1898 = vadd.f32 %v1834, %v1630
      %v1899 = vadd.f32 %v1835, %v1635
      %v1900 = vadd.f32 %v1836, %v1638
      %v1901 = vadd.f32 %v1837, %v1643
      %v1902 = vadd.f32 %v1838, %v1646
      %v1903 = vadd.f32 %v1839, %v1651
      %v1904 = vadd.f32 %v1840, %v1654
      %v1905 = vadd.f32 %v1841, %v1659
      %v1906 = vadd.f32 %v1842, %v1662
      %v1907 = vadd.f32 %v1843, %v1667
      %v1908 = vadd.f32 %v1844, %v1670
      %v1909 = vadd.f32 %v1845, %v1675
      %v1910 = vadd.f32 %v1846, %v1678
      %v1911 = vadd.f32 %v1847, %v1683
      %v1912 = vadd.f32 %v1848, %v1686
      %v1913 = vadd.f32 %v1849, %v1691
      %v1914 = vadd.f32 %v1850, %v1694
      %v1915 = vadd.f32 %v1851, %v1699
      %v1916 = vadd.f32 %v1852, %v1702
      %v1917 = vadd.f32 %v1853, %v1707
      %v1918 = vadd.f32 %v1854, %v1710
      %v1919 = vadd.f32 %v1855, %v1715
      %v1920 = vadd.f32 %v1856, %v1718
      %v1921 = vadd.f32 %v1857, %v1723
      %v1922 = vadd.f32 %v1858, %v1726
      %v1923 = vadd.f32 %v1859, %v1731
      %v1924 = vadd.f32 %v1860, %v1734
      %v1925 = vadd.f32 %v1861, %v1739
      %v1926 = vadd.f32 %v1862, %v1742
      %v1927 = vadd.f32 %v1863, %v1747
      %v1928 = vadd.f32 %v1864, %v1750
      %v1929 = vadd.f32 %v1865, %v1755
      %v1930 = vadd.f32 %v1866, %v1758
      %v1931 = vadd.f32 %v1867, %v1763
      %v1932 = vadd.f32 %v1868, %v1766
      %v1933 = vadd.f32 %v1869, %v1771
      %v1934 = vadd.f32 %v1870, %v1774
      %v1935 = vadd.f32 %v1871, %v1779
      %v1936 = vadd.f32 %v1872, %v1782
      %v1937 = vadd.f32 %v1873, %v1787
      %v1938 = vadd.f32 %v1874, %v1790
      %v1939 = vadd.f32 %v1875, %v1795
      %v1940 = vadd.f32 %v1876, %v1798
      %v1941 = vadd.f32 %v1877, %v1803
      %v1942 = vadd.f32 %v1878, %v1806
      %v1943 = vadd.f32 %v1879, %v1811
      %v1944 = vadd.f32 %v1880, %v1814
      %1945 = vst [vmem:[%s145] sm:$0xff] %v1881
      %1946 = vst [vmem:[%s145 + $0x8] sm:$0xff] %v1882
      %1947 = vst [vmem:[%s145 + $0x10] sm:$0xff] %v1883
      %1948 = vst [vmem:[%s145 + $0x18] sm:$0xff] %v1884
      %1949 = vst [vmem:[%s145 + $0x20] sm:$0xff] %v1885
      %1950 = vst [vmem:[%s145 + $0x28] sm:$0xff] %v1886
      %1951 = vst [vmem:[%s145 + $0x30] sm:$0xff] %v1887
      %1952 = vst [vmem:[%s145 + $0x38] sm:$0xff] %v1888
      %1953 = vst [vmem:[%s145 + $0x40] sm:$0xff] %v1889
      %1954 = vst [vmem:[%s145 + $0x48] sm:$0xff] %v1890
      %1955 = vst [vmem:[%s145 + $0x50] sm:$0xff] %v1891
      %1956 = vst [vmem:[%s145 + $0x58] sm:$0xff] %v1892
      %1957 = vst [vmem:[%s145 + $0x60] sm:$0xff] %v1893
      %1958 = vst [vmem:[%s145 + $0x68] sm:$0xff] %v1894
      %1959 = vst [vmem:[%s145 + $0x70] sm:$0xff] %v1895
      %1960 = vst [vmem:[%s145 + $0x78] sm:$0xff] %v1896
      %1961 = vst [vmem:[%s145 + $0x80] sm:$0xff] %v1897
      %1962 = vst [vmem:[%s145 + $0x88] sm:$0xff] %v1898
      %1963 = vst [vmem:[%s145 + $0x90] sm:$0xff] %v1899
      %1964 = vst [vmem:[%s145 + $0x98] sm:$0xff] %v1900
      %1965 = vst [vmem:[%s145 + $0xa0] sm:$0xff] %v1901
      %1966 = vst [vmem:[%s145 + $0xa8] sm:$0xff] %v1902
      %1967 = vst [vmem:[%s145 + $0xb0] sm:$0xff] %v1903
      %1968 = vst [vmem:[%s145 + $0xb8] sm:$0xff] %v1904
      %1969 = vst [vmem:[%s145 + $0xc0] sm:$0xff] %v1905
      %1970 = vst [vmem:[%s145 + $0xc8] sm:$0xff] %v1906
      %1971 = vst [vmem:[%s145 + $0xd0] sm:$0xff] %v1907
      %1972 = vst [vmem:[%s145 + $0xd8] sm:$0xff] %v1908
      %1973 = vst [vmem:[%s145 + $0xe0] sm:$0xff] %v1909
      %1974 = vst [vmem:[%s145 + $0xe8] sm:$0xff] %v1910
      %1975 = vst [vmem:[%s145 + $0xf0] sm:$0xff] %v1911
      %1976 = vst [vmem:[%s145 + $0xf8] sm:$0xff] %v1912
      %1977 = vst [vmem:[%s145 + $0x100] sm:$0xff] %v1913
      %1978 = vst [vmem:[%s145 + $0x108] sm:$0xff] %v1914
      %1979 = vst [vmem:[%s145 + $0x110] sm:$0xff] %v1915
      %1980 = vst [vmem:[%s145 + $0x118] sm:$0xff] %v1916
      %1981 = vst [vmem:[%s145 + $0x120] sm:$0xff] %v1917
      %1982 = vst [vmem:[%s145 + $0x128] sm:$0xff] %v1918
      %1983 = vst [vmem:[%s145 + $0x130] sm:$0xff] %v1919
      %1984 = vst [vmem:[%s145 + $0x138] sm:$0xff] %v1920
      %1985 = vst [vmem:[%s145 + $0x140] sm:$0xff] %v1921
      %1986 = vst [vmem:[%s145 + $0x148] sm:$0xff] %v1922
      %1987 = vst [vmem:[%s145 + $0x150] sm:$0xff] %v1923
      %1988 = vst [vmem:[%s145 + $0x158] sm:$0xff] %v1924
      %1989 = vst [vmem:[%s145 + $0x160] sm:$0xff] %v1925
      %1990 = vst [vmem:[%s145 + $0x168] sm:$0xff] %v1926
      %1991 = vst [vmem:[%s145 + $0x170] sm:$0xff] %v1927
      %1992 = vst [vmem:[%s145 + $0x178] sm:$0xff] %v1928
      %1993 = vst [vmem:[%s145 + $0x180] sm:$0xff] %v1929
      %1994 = vst [vmem:[%s145 + $0x188] sm:$0xff] %v1930
      %1995 = vst [vmem:[%s145 + $0x190] sm:$0xff] %v1931
      %1996 = vst [vmem:[%s145 + $0x198] sm:$0xff] %v1932
      %1997 = vst [vmem:[%s145 + $0x1a0] sm:$0xff] %v1933
      %1998 = vst [vmem:[%s145 + $0x1a8] sm:$0xff] %v1934
      %1999 = vst [vmem:[%s145 + $0x1b0] sm:$0xff] %v1935
      %2000 = vst [vmem:[%s145 + $0x1b8] sm:$0xff] %v1936
      %2001 = vst [vmem:[%s145 + $0x1c0] sm:$0xff] %v1937
      %2002 = vst [vmem:[%s145 + $0x1c8] sm:$0xff] %v1938
      %2003 = vst [vmem:[%s145 + $0x1d0] sm:$0xff] %v1939
      %2004 = vst [vmem:[%s145 + $0x1d8] sm:$0xff] %v1940
      %2005 = vst [vmem:[%s145 + $0x1e0] sm:$0xff] %v1941
      %2006 = vst [vmem:[%s145 + $0x1e8] sm:$0xff] %v1942
      %2007 = vst [vmem:[%s145 + $0x1f0] sm:$0xff] %v1943
      %2008 = vst [vmem:[%s145 + $0x1f8] sm:$0xff] %v1944
      %s2009 = smul.u32 64, %s13
      %p2010 = scmp.lt.s32.totalorder %s2009, 191
      %s2011 = scalar_select %p2010, %s2009, 191
      %s2012 = smul.addr %s2011, 8
      %s2013 = scalar_lea.vmem %s2, %s2012
      // Predicated region
      $region29: #{_frequency_bias_forward.1} parent=27 // pred_check
        %p2014 = pneg %p78
      $region30: #{_frequency_bias_forward.1} parent=27 // pred_check_branch
        %2016 = sbr.rel (%p2014) target = $region32
      $region31: #{_frequency_bias_forward.1} parent=27 // pred_region
        %s2017 = smul.u32 64, %s13
      $region32: #{_frequency_bias_forward.1} parent=27 // pred_fallthru
        _
    $region28: #{_frequency_bias_forward.1} parent=5 // pred_fallthru
      _
    %p2018 = scmp.le.s32.totalorder 2, %s8
    // Predicated region
    $region33: #{_frequency_bias_forward.1} parent=5 // pred_check
      %p2019 = pneg %p2018
    $region34: #{_frequency_bias_forward.1} parent=5 // pred_check_branch
      %2021 = sbr.rel (%p2019) target = $region36
    $region35: #{_frequency_bias_forward.1} parent=5 // pred_region
      %s2022 = ssub.s32 %s8, 2
      // Predicated region
      $region37: #{_frequency_bias_forward.1} parent=35 // pred_check
        %p2023 = pneg %p84
      $region38: #{_frequency_bias_forward.1} parent=35 // pred_check_branch
        %2025 = sbr.rel (%p2023) target = $region40
      $region39: #{_frequency_bias_forward.1} parent=35 // pred_region
        %s2026 = smul.u32 64, %s14
        %p2027 = scmp.lt.s32.totalorder %s2026, 191
        %s2028 = scalar_select %p2027, %s2026, 191
        %s2029 = smul.addr %s2028, 8
        %s2030 = scalar_lea.vmem %s2, %s2029
      $region40: #{_frequency_bias_forward.1} parent=35 // pred_fallthru
        _
    $region36: #{_frequency_bias_forward.1} parent=5 // pred_fallthru
      _
  $region6: #{_frequency_bias_forward.1} parent=0 // loop_footer
    %s12 = sadd.s32 1, %s8
  $region7: #{_frequency_bias_forward.1} parent=0 // loop_footer_branch
    %7 = sbr.rel target = $region3
  $region8: #{_frequency_bias_forward.1} parent=0 // loop_exit
    _

</llo_original>
